<compile_context>
chip_gen: v6e
topology: v6e:2x2x1
jax: 0.10.0
libtpu: 0.0.40
codegen_flags: <defaults>
</compile_context>

<pallas_src>
import math

import jax
import jax.numpy as jnp
from jax.experimental import pallas as pl
from jax.experimental.pallas import tpu as pltpu

FEAT_IN = 512    # f1 input features
HID1 = 512       # f1 output features
HID2 = 256       # regression output features
HEAD_PAD = 128   # lane-dense padded head width (only columns 0..2 are used)


def goal_mlp_kernel(x1_ref, x2_ref, w1_ref, b1_ref, w2_ref, b2_ref,
                    wh_ref, bh_ref, out_ref):
    mm_dtype = w1_ref.dtype
    w1 = w1_ref[...]
    b1 = b1_ref[...]

    # Two dots against the same resident W1 (Mosaic keeps an identical RHS in
    # the MXU weight registers across consecutive dots) -- avoids the VMEM
    # concat copy and the 2x-tall f32 accumulator of the fused variant.
    h1 = jnp.dot(x1_ref[...].astype(mm_dtype), w1,
                 preferred_element_type=jnp.float32)
    h2 = jnp.dot(x2_ref[...].astype(mm_dtype), w1,
                 preferred_element_type=jnp.float32)

    # f32 ReLU on the VPU, then the elementwise product (torch.mul).
    m = jnp.maximum(h1 + b1, 0.0) * jnp.maximum(h2 + b1, 0.0)

    r = jnp.dot(m.astype(w2_ref.dtype), w2_ref[...],
                preferred_element_type=jnp.float32)
    r = jnp.maximum(r + b2_ref[...], 0.0)
    # Dropout(0.5) is identity in eval mode.

    # Lane-dense fused heads: [tb, 256] @ [256, 128]; cols 0/1/2 = dist/rot/switch.
    heads = jnp.dot(r.astype(wh_ref.dtype), wh_ref[...],
                    preferred_element_type=jnp.float32) + bh_ref[...]
    col = jax.lax.broadcasted_iota(jnp.int32, heads.shape, 1)
    out_ref[...] = jnp.where(col == 2, jax.nn.sigmoid(heads),
                             heads).astype(out_ref.dtype)


def _tpu_topology():
    """(physical VMEM bytes per TensorCore, whether chip has >= 2 TCs)."""
    vmem_bytes = 128 << 20
    two_cores = False
    try:
        info = pltpu.get_tpu_info()
        vmem_bytes = int(getattr(info, "vmem_capacity_bytes", vmem_bytes))
        cores = None
        for name in ("num_cores", "tensor_cores_per_chip", "cores_per_chip",
                     "num_tensorcores"):
            val = getattr(info, name, None)
            if val:
                cores = int(val)
                break
        if cores is not None:
            two_cores = cores >= 2
        else:
            # Heuristic: v7x is the only multi-TC generation here and is also
            # the only one with a 64 MiB (not 128 MiB) VMEM per TensorCore.
            two_cores = vmem_bytes <= (64 << 20)
    except Exception:
        pass  # fall back to conservative single-core / 128 MiB defaults
    return vmem_bytes, two_cores


def _round_up8(n: int) -> int:
    return max(8, ((n + 7) // 8) * 8)


def _pick_batch_tile(B: int, vmem_bytes: int, two_cores: bool) -> int:
    if two_cores:
        # v7x: keep grid length >= 2 so both TensorCores get work
        # (dimension_semantics=("parallel",) shards the grid across TCs).
        if B < 512:
            return _round_up8(pl.cdiv(B, 2))
        if B < 2048:
            return 256
        return 512
    # v5e/v6e: single TC -> the grid is a serial loop, so grid length >= 2 buys
    # nothing; the biggest tile that fits VMEM amortizes the ~0.35 us/step
    # pipeline overhead.  ~20 MiB live at tb=1024 is fine under 128 MiB with
    # vmem_limit_bytes raised below.
    cap = 1024 if vmem_bytes >= (96 << 20) else 512
    return min(_round_up8(B), cap)


def prepare_params(params, matmul_dtype=jnp.bfloat16):
    """One-time weight prep: cast to the MXU matmul dtype and lane-pad the
    fused [256, 3] head to [256, 128].  Idempotent (already-prepared params are
    passed through), so it can be done once at parameter-load time."""
    w1, b1, w2, b2, wh, bh = params
    if wh.shape[1] == HEAD_PAD:
        return params
    whc = jnp.zeros((HID2, HEAD_PAD), matmul_dtype)
    whc = whc.at[:, :wh.shape[1]].set(wh.astype(matmul_dtype))
    bhc = jnp.zeros((1, HEAD_PAD), jnp.float32)
    bhc = bhc.at[:, :bh.shape[1]].set(bh.astype(jnp.float32))
    return (w1.astype(matmul_dtype), b1.astype(jnp.float32),
            w2.astype(matmul_dtype), b2.astype(jnp.float32), whc, bhc)


def goal_mlp_forward(x1, x2, params, *, tb=None, matmul_dtype=jnp.bfloat16):
    B, feat = x1.shape
    assert feat == FEAT_IN and x2.shape == x1.shape

    # Accepts raw params (prep runs here) or pre-prepared params (no-op).
    w1c, b1c, w2c, b2c, whc, bhc = prepare_params(params, matmul_dtype)

    vmem_bytes, two_cores = _tpu_topology()
    if tb is None:
        tb = _pick_batch_tile(B, vmem_bytes, two_cores)
    assert tb % 8 == 0

    # Batch remainders: pad up to a tile multiple (rows sliced off afterwards).
    Bp = pl.cdiv(B, tb) * tb
    if Bp != B:
        pad = ((0, Bp - B), (0, 0))
        x1 = jnp.pad(x1, pad)
        x2 = jnp.pad(x2, pad)

    # bf16 output halves HBM writeback on the mem-bound path; keep f32 output
    # when the caller asks for exact f32 matmuls.
    out_dtype = jnp.bfloat16 if matmul_dtype == jnp.bfloat16 else jnp.float32

    grid = (Bp // tb,)
    batch_spec = pl.BlockSpec((tb, FEAT_IN), lambda i: (i, 0))
    out_spec = pl.BlockSpec((tb, HEAD_PAD), lambda i: (i, 0))
    full = lambda shape: pl.BlockSpec(shape, lambda i: (0, 0))

    # Raise the scoped VMEM limit so the larger single-TC tiles fit; derived
    # from physical VMEM (64 MiB on v7x, 128 MiB on v5e/v6e).
    vmem_limit = int(min(vmem_bytes * 3 // 4, 64 << 20))

    flops = 2 * Bp * (2 * FEAT_IN * HID1 + HID1 * HID2 + HID2 * HEAD_PAD)
    bytes_accessed = int(
        2 * Bp * FEAT_IN * jnp.dtype(x1.dtype).itemsize
        + sum(int(a.size) * jnp.dtype(a.dtype).itemsize
              for a in (w1c, b1c, w2c, b2c, whc, bhc))
        + Bp * HEAD_PAD * jnp.dtype(out_dtype).itemsize)

    heads = pl.pallas_call(
        goal_mlp_kernel,
        out_shape=jax.ShapeDtypeStruct((Bp, HEAD_PAD), out_dtype),
        grid_spec=pltpu.PrefetchScalarGridSpec(
            num_scalar_prefetch=0,
            grid=grid,
            in_specs=[
                batch_spec,                   # x1 (f32 or bf16; cast in-kernel)
                batch_spec,                   # x2
                full((FEAT_IN, HID1)),        # W1  (f1)
                full((1, HID1)),              # b1
                full((HID1, HID2)),           # W2  (regression)
                full((1, HID2)),              # b2
                full((HID2, HEAD_PAD)),       # Wh  (dist|rot|switch, lane-padded)
                full((1, HEAD_PAD)),          # bh
            ],
            out_specs=out_spec,
        ),
        compiler_params=pltpu.CompilerParams(
            dimension_semantics=("parallel",),
            vmem_limit_bytes=vmem_limit),
        cost_estimate=pl.CostEstimate(
            flops=flops,
            transcendentals=Bp * 3,   # only 3 head lanes are actually used
            bytes_accessed=bytes_accessed),
    )(x1, x2, w1c, b1c, w2c, b2c, whc, bhc)

    # Single gather of the 3 useful columns, then split (column 2 already has
    # the sigmoid applied in-kernel).
    heads3 = heads[:B, :3].astype(jnp.float32)
    return heads3[:, 0:1], heads3[:, 1:2], heads3[:, 2:3]


def init_params(key):
    """Deterministic parameter init mirroring the PyTorch module's shapes.

    Linear layers use U(-1/sqrt(fan_in), 1/sqrt(fan_in)) (PyTorch default);
    the three heads use xavier_uniform with zero bias, as in initialize().
    Weights are returned pre-transposed as [in, out].
    """
    k1, k1b, k2, k2b, kd, kr, ks = jax.random.split(key, 7)

    def default_linear(kw, kb, fan_in, fan_out):
        bound = 1.0 / math.sqrt(fan_in)
        w = jax.random.uniform(kw, (fan_in, fan_out), jnp.float32, -bound, bound)
        b = jax.random.uniform(kb, (1, fan_out), jnp.float32, -bound, bound)
        return w, b

    def xavier_head(k, fan_in, fan_out=1):
        bound = math.sqrt(6.0 / (fan_in + fan_out))
        return jax.random.uniform(k, (fan_in, fan_out), jnp.float32, -bound, bound)

    w1, b1 = default_linear(k1, k1b, FEAT_IN, HID1)    # f1
    w2, b2 = default_linear(k2, k2b, HID1, HID2)       # regression
    wd = xavier_head(kd, HID2)
    wr = xavier_head(kr, HID2)
    ws = xavier_head(ks, HID2)
    wh = jnp.concatenate([wd, wr, ws], axis=1)         # [256, 3]
    bh = jnp.zeros((1, 3), jnp.float32)                # zeroed biases
    return (w1, b1, w2, b2, wh, bh)


def reference_forward(x1, x2, params, matmul_dtype=jnp.float32):
    """Pure-JAX reference with the same matmul-operand dtype as the kernel."""
    w1, b1, w2, b2, wh, bh = params
    c = lambda a: a.astype(matmul_dtype)
    h1 = jnp.maximum(
        jnp.dot(c(x1), c(w1), preferred_element_type=jnp.float32) + b1, 0.0)
    h2 = jnp.maximum(
        jnp.dot(c(x2), c(w1), preferred_element_type=jnp.float32) + b1, 0.0)
    m = h1 * h2
    r = jnp.maximum(
        jnp.dot(c(m), c(w2), preferred_element_type=jnp.float32) + b2, 0.0)
    heads = jnp.dot(c(r), c(wh), preferred_element_type=jnp.float32) + bh
    return heads[:, 0:1], heads[:, 1:2], jax.nn.sigmoid(heads[:, 2:3])


if __name__ == "__main__":
    key = jax.random.PRNGKey(0)
    kp, kx1, kx2 = jax.random.split(key, 3)

    params = init_params(kp)
    # Hoisted weight prep: cast/pad once, reuse across forward calls.
    params_bf16 = prepare_params(params, jnp.bfloat16)

    # Case 1: small batch that is NOT a tile multiple (exercises padding path),
    # default bf16 matmuls + bf16 output.
    B1 = 12
    x1 = jax.random.normal(kx1, (B1, FEAT_IN), jnp.float32)
    x2 = jax.random.normal(kx2, (B1, FEAT_IN), jnp.float32)
    d, r, s = jax.block_until_ready(goal_mlp_forward(x1, x2, params_bf16))
    d_ref, r_ref, s_ref = reference_forward(x1, x2, params, jnp.bfloat16)
    assert d.shape == (B1, 1) and r.shape == (B1, 1) and s.shape == (B1, 1)
    assert jnp.allclose(d, d_ref, atol=1e-2, rtol=1e-2)
    assert jnp.allclose(r, r_ref, atol=1e-2, rtol=1e-2)
    assert jnp.allclose(s, s_ref, atol=1e-2, rtol=1e-2)

    # Case 1b: f32 matmuls + f32 output match the pure-f32 reference tightly.
    d32, r32, s32 = jax.block_until_ready(
        goal_mlp_forward(x1, x2, params, matmul_dtype=jnp.float32))
    d_f, r_f, s_f = reference_forward(x1, x2, params, jnp.float32)
    assert jnp.allclose(d32, d_f, atol=1e-4, rtol=1e-4)
    assert jnp.allclose(r32, r_f, atol=1e-4, rtol=1e-4)
    assert jnp.allclose(s32, s_f, atol=1e-4, rtol=1e-4)

    # Case 2: explicit small tile with a multi-step grid (grid length 3).
    B2 = 24
    x1b = jax.random.normal(jax.random.fold_in(kx1, 1), (B2, FEAT_IN), jnp.float32)
    x2b = jax.random.normal(jax.random.fold_in(kx2, 1), (B2, FEAT_IN), jnp.float32)
    d2, r2, s2 = jax.block_until_ready(
        goal_mlp_forward(x1b, x2b, params_bf16, tb=8))
    d2_ref, r2_ref, s2_ref = reference_forward(x1b, x2b, params, jnp.bfloat16)
    assert jnp.allclose(d2, d2_ref, atol=1e-2, rtol=1e-2)
    assert jnp.allclose(r2, r2_ref, atol=1e-2, rtol=1e-2)
    assert jnp.allclose(s2, s2_ref, atol=1e-2, rtol=1e-2)

    # Case 3: bf16 inputs streamed directly (halves input HBM bytes; the
    # in-kernel cast becomes a no-op).
    d3, r3, s3 = jax.block_until_ready(
        goal_mlp_forward(x1.astype(jnp.bfloat16), x2.astype(jnp.bfloat16),
                         params_bf16))
    assert jnp.allclose(d3, d_ref, atol=2e-2, rtol=2e-2)
    assert jnp.allclose(r3, r_ref, atol=2e-2, rtol=2e-2)
    assert jnp.allclose(s3, s_ref, atol=2e-2, rtol=2e-2)

    print("KERNEL_OK")
</pallas_src>

<mosaic_0001>
module attributes {stable_mosaic.version = 11 : i64} {
  func.func @goal_mlp_kernel(%arg0: i32, %arg1: memref<16x512xf32, #tpu.memory_space<vmem>>, %arg2: memref<16x512xf32, #tpu.memory_space<vmem>>, %arg3: memref<512x512xbf16, #tpu.memory_space<vmem>>, %arg4: memref<1x512xf32, #tpu.memory_space<vmem>>, %arg5: memref<512x256xbf16, #tpu.memory_space<vmem>>, %arg6: memref<1x256xf32, #tpu.memory_space<vmem>>, %arg7: memref<256x128xbf16, #tpu.memory_space<vmem>>, %arg8: memref<1x128xf32, #tpu.memory_space<vmem>>, %arg9: memref<16x128xbf16, #tpu.memory_space<vmem>>) attributes {dimension_semantics = [#tpu.dimension_semantics<parallel>], iteration_bounds = array<i64: 1>, scalar_prefetch = 0 : i64, scratch_operands = 0 : i64, tpu.core_type = #tpu.core_type<tc>, window_params = [{transform_indices = @transform_0, window_bounds = array<i64: 16, 512>}, {transform_indices = @transform_1, window_bounds = array<i64: 16, 512>}, {pipeline_mode = #tpu.pipeline_mode<synchronous>, transform_indices = @transform_2, window_bounds = array<i64: 512, 512>}, {pipeline_mode = #tpu.pipeline_mode<synchronous>, transform_indices = @transform_3, window_bounds = array<i64: 1, 512>}, {pipeline_mode = #tpu.pipeline_mode<synchronous>, transform_indices = @transform_4, window_bounds = array<i64: 512, 256>}, {pipeline_mode = #tpu.pipeline_mode<synchronous>, transform_indices = @transform_5, window_bounds = array<i64: 1, 256>}, {pipeline_mode = #tpu.pipeline_mode<synchronous>, transform_indices = @transform_6, window_bounds = array<i64: 256, 128>}, {pipeline_mode = #tpu.pipeline_mode<synchronous>, transform_indices = @transform_7, window_bounds = array<i64: 1, 128>}, {transform_indices = @transform_8, window_bounds = array<i64: 16, 128>}]} {
    %c0 = arith.constant 0 : index
    %c0_0 = arith.constant 0 : index
    %0 = vector.load %arg3[%c0, %c0_0] : memref<512x512xbf16, #tpu.memory_space<vmem>>, vector<512x512xbf16>
    %c0_1 = arith.constant 0 : index
    %c0_2 = arith.constant 0 : index
    %1 = vector.load %arg4[%c0_1, %c0_2] : memref<1x512xf32, #tpu.memory_space<vmem>>, vector<1x512xf32>
    %c0_3 = arith.constant 0 : index
    %c0_4 = arith.constant 0 : index
    %2 = vector.load %arg1[%c0_3, %c0_4] : memref<16x512xf32, #tpu.memory_space<vmem>>, vector<16x512xf32>
    %3 = arith.truncf %2 : vector<16x512xf32> to vector<16x512xbf16>
    %cst = arith.constant dense<0.000000e+00> : vector<16x512xf32>
    %4 = tpu.matmul %3, %0, %cst {dimension_numbers = #tpu.dot_dimension_numbers<[1], [0], [0], [1], [0, 0, 1, 1], [], []>} : vector<16x512xbf16>, vector<512x512xbf16>, vector<16x512xf32> -> vector<16x512xf32>
    %c0_5 = arith.constant 0 : index
    %c0_6 = arith.constant 0 : index
    %5 = vector.load %arg2[%c0_5, %c0_6] : memref<16x512xf32, #tpu.memory_space<vmem>>, vector<16x512xf32>
    %6 = arith.truncf %5 : vector<16x512xf32> to vector<16x512xbf16>
    %cst_7 = arith.constant dense<0.000000e+00> : vector<16x512xf32>
    %7 = tpu.matmul %6, %0, %cst_7 {dimension_numbers = #tpu.dot_dimension_numbers<[1], [0], [0], [1], [0, 0, 1, 1], [], []>} : vector<16x512xbf16>, vector<512x512xbf16>, vector<16x512xf32> -> vector<16x512xf32>
    %8 = vector.broadcast %1 : vector<1x512xf32> to vector<16x512xf32>
    %9 = arith.addf %4, %8 : vector<16x512xf32>
    %cst_8 = arith.constant 0.000000e+00 : f32
    %10 = vector.broadcast %cst_8 : f32 to vector<16x512xf32>
    %11 = arith.maximumf %9, %10 : vector<16x512xf32>
    %12 = vector.broadcast %1 : vector<1x512xf32> to vector<16x512xf32>
    %13 = arith.addf %7, %12 : vector<16x512xf32>
    %cst_9 = arith.constant 0.000000e+00 : f32
    %14 = vector.broadcast %cst_9 : f32 to vector<16x512xf32>
    %15 = arith.maximumf %13, %14 : vector<16x512xf32>
    %16 = arith.mulf %11, %15 : vector<16x512xf32>
    %17 = arith.truncf %16 : vector<16x512xf32> to vector<16x512xbf16>
    %c0_10 = arith.constant 0 : index
    %c0_11 = arith.constant 0 : index
    %18 = vector.load %arg5[%c0_10, %c0_11] : memref<512x256xbf16, #tpu.memory_space<vmem>>, vector<512x256xbf16>
    %cst_12 = arith.constant dense<0.000000e+00> : vector<16x256xf32>
    %19 = tpu.matmul %17, %18, %cst_12 {dimension_numbers = #tpu.dot_dimension_numbers<[1], [0], [0], [1], [0, 0, 1, 1], [], []>} : vector<16x512xbf16>, vector<512x256xbf16>, vector<16x256xf32> -> vector<16x256xf32>
    %c0_13 = arith.constant 0 : index
    %c0_14 = arith.constant 0 : index
    %20 = vector.load %arg6[%c0_13, %c0_14] : memref<1x256xf32, #tpu.memory_space<vmem>>, vector<1x256xf32>
    %21 = vector.broadcast %20 : vector<1x256xf32> to vector<16x256xf32>
    %22 = arith.addf %19, %21 : vector<16x256xf32>
    %cst_15 = arith.constant 0.000000e+00 : f32
    %23 = vector.broadcast %cst_15 : f32 to vector<16x256xf32>
    %24 = arith.maximumf %22, %23 : vector<16x256xf32>
    %25 = arith.truncf %24 : vector<16x256xf32> to vector<16x256xbf16>
    %c0_16 = arith.constant 0 : index
    %c0_17 = arith.constant 0 : index
    %26 = vector.load %arg7[%c0_16, %c0_17] : memref<256x128xbf16, #tpu.memory_space<vmem>>, vector<256x128xbf16>
    %cst_18 = arith.constant dense<0.000000e+00> : vector<16x128xf32>
    %27 = tpu.matmul %25, %26, %cst_18 {dimension_numbers = #tpu.dot_dimension_numbers<[1], [0], [0], [1], [0, 0, 1, 1], [], []>} : vector<16x256xbf16>, vector<256x128xbf16>, vector<16x128xf32> -> vector<16x128xf32>
    %c0_19 = arith.constant 0 : index
    %c0_20 = arith.constant 0 : index
    %28 = vector.load %arg8[%c0_19, %c0_20] : memref<1x128xf32, #tpu.memory_space<vmem>>, vector<1x128xf32>
    %29 = vector.broadcast %28 : vector<1x128xf32> to vector<16x128xf32>
    %30 = arith.addf %27, %29 : vector<16x128xf32>
    %31 = tpu.iota {dimensions = array<i32: 1>} : vector<16x128xi32>
    %c2_i32 = arith.constant 2 : i32
    %32 = vector.broadcast %c2_i32 : i32 to vector<16x128xi32>
    %33 = arith.cmpi eq, %31, %32 : vector<16x128xi32>
    %34 = arith.negf %30 : vector<16x128xf32>
    %35 = math.exp %34 : vector<16x128xf32>
    %cst_21 = arith.constant 1.000000e+00 : f32
    %36 = vector.broadcast %cst_21 : f32 to vector<16x128xf32>
    %37 = arith.addf %36, %35 : vector<16x128xf32>
    %38 = arith.divf %36, %37 : vector<16x128xf32>
    %39 = arith.select %33, %38, %30 : vector<16x128xi1>, vector<16x128xf32>
    %40 = arith.truncf %39 : vector<16x128xf32> to vector<16x128xbf16>
    %c0_22 = arith.constant 0 : index
    %c0_23 = arith.constant 0 : index
    %41 = vector.load %arg9[%c0_22, %c0_23] : memref<16x128xbf16, #tpu.memory_space<vmem>>, vector<16x128xbf16>
    tpu.vector_store %arg9[%c0_22, %c0_23], %40 {strides = array<i32>} : memref<16x128xbf16, #tpu.memory_space<vmem>>, vector<16x128xbf16>,
    return
  }
  func.func @transform_0(%arg0: i32) -> (i32, i32) {
    %c0_i32 = arith.constant 0 : i32
    %c0_i32_0 = arith.constant 0 : i32
    return %arg0, %c0_i32 : i32, i32
  }
  func.func @transform_1(%arg0: i32) -> (i32, i32) {
    %c0_i32 = arith.constant 0 : i32
    %c0_i32_0 = arith.constant 0 : i32
    return %arg0, %c0_i32 : i32, i32
  }
  func.func @transform_2(%arg0: i32) -> (i32, i32) {
    %c0_i32 = arith.constant 0 : i32
    %c0_i32_0 = arith.constant 0 : i32
    %c0_i32_1 = arith.constant 0 : i32
    return %c0_i32, %c0_i32_0 : i32, i32
  }
  func.func @transform_3(%arg0: i32) -> (i32, i32) {
    %c0_i32 = arith.constant 0 : i32
    %c0_i32_0 = arith.constant 0 : i32
    %c0_i32_1 = arith.constant 0 : i32
    return %c0_i32, %c0_i32_0 : i32, i32
  }
  func.func @transform_4(%arg0: i32) -> (i32, i32) {
    %c0_i32 = arith.constant 0 : i32
    %c0_i32_0 = arith.constant 0 : i32
    %c0_i32_1 = arith.constant 0 : i32
    return %c0_i32, %c0_i32_0 : i32, i32
  }
  func.func @transform_5(%arg0: i32) -> (i32, i32) {
    %c0_i32 = arith.constant 0 : i32
    %c0_i32_0 = arith.constant 0 : i32
    %c0_i32_1 = arith.constant 0 : i32
    return %c0_i32, %c0_i32_0 : i32, i32
  }
  func.func @transform_6(%arg0: i32) -> (i32, i32) {
    %c0_i32 = arith.constant 0 : i32
    %c0_i32_0 = arith.constant 0 : i32
    %c0_i32_1 = arith.constant 0 : i32
    return %c0_i32, %c0_i32_0 : i32, i32
  }
  func.func @transform_7(%arg0: i32) -> (i32, i32) {
    %c0_i32 = arith.constant 0 : i32
    %c0_i32_0 = arith.constant 0 : i32
    %c0_i32_1 = arith.constant 0 : i32
    return %c0_i32, %c0_i32_0 : i32, i32
  }
  func.func @transform_8(%arg0: i32) -> (i32, i32) {
    %c0_i32 = arith.constant 0 : i32
    %c0_i32_0 = arith.constant 0 : i32
    return %arg0, %c0_i32 : i32, i32
  }
}

</mosaic_0001>

<llo_original>
// kernel: tpu_custom_call.1
$region0: #{tpu_custom_call.1}
  #allocation0 [shape = 'u32[]', space=smem, size = 0x4, offset = 0x4, fixed_abs, tag = 'smem constant byte address 0x4 - core index']
  #allocation1 [shape = 'u32[144,128]{1,0:T(1,128)}', space=vmem, size = 0x12000, scoped, tag = 'internal scratch']
  %s0 = inlined_call_operand.hbm [shape: f32[16,512], index: 0, kind: input, shape index: {}]
  %s1 = inlined_call_operand.hbm [shape: f32[16,512], index: 1, kind: input, shape index: {}]
  %s2 = inlined_call_operand.hbm [shape: bf16[512,512], index: 2, kind: input, shape index: {}]
  %s3 = inlined_call_operand.vmem [shape: f32[1,512], index: 3, kind: input, shape index: {}]
  %s4 = inlined_call_operand.hbm [shape: bf16[512,256], index: 4, kind: input, shape index: {}]
  %s5 = inlined_call_operand.vmem [shape: f32[1,256], index: 5, kind: input, shape index: {}]
  %s6 = inlined_call_operand.hbm [shape: bf16[256,128], index: 6, kind: input, shape index: {}]
  %s7 = inlined_call_operand.vmem [shape: f32[1,128], index: 7, kind: input, shape index: {}]
  %s8 = inlined_call_operand.hbm [shape: bf16[16,128], index: 8, kind: output, shape index: {}]
  %s9 = sld [smem:[#allocation0]]
  $region62: #{tpu_custom_call.1} parent=0
    _
  %s11 = ssub.s32 1, %s9
  %s12 = scalar_select 0, %s11, %s9
  $region1: #{tpu_custom_call.1} parent=0
    #allocation2 [shape = 'u8[32768]{0}', space=vmem, size = 0x8000, scoped, tag = 'input window, operand 0, single buffered']
    #allocation3 [shape = 's32[1]{0}', space=sflag, size = 0x4, scoped, tag = 'scoped memory for tpu_custom_call.1']
    #allocation4 [shape = 's32[1]{0}', space=sflag, size = 0x4, scoped, tag = 'scoped memory for tpu_custom_call.1']
    #allocation5 [shape = 'u8[32768]{0}', space=vmem, size = 0x8000, scoped, tag = 'input window, operand 1, single buffered']
    #allocation6 [shape = 's32[1]{0}', space=sflag, size = 0x4, scoped, tag = 'scoped memory for tpu_custom_call.1']
    #allocation7 [shape = 'u8[524288]{0}', space=vmem, size = 0x80000, scoped, tag = 'input window, operand 2, single buffered']
    #allocation8 [shape = 'u8[262144]{0}', space=vmem, size = 0x40000, scoped, tag = 'input window, operand 4, single buffered']
    #allocation9 [shape = 's32[1]{0}', space=sflag, size = 0x4, scoped, tag = 'scoped memory for tpu_custom_call.1']
    #allocation10 [shape = 'u8[65536]{0}', space=vmem, size = 0x10000, scoped, tag = 'input window, operand 6, single buffered']
    #allocation11 [shape = 'u8[4096]{0}', space=vmem, size = 0x1000, scoped, tag = 'output window, operand 0, single buffered']
    %13 = vsyncpa [#allocation3], 0
    %14 = vsyncpa [#allocation6], 0
    %15 = vsyncpa [#allocation9], 0
    %16 = vsyncpa [#allocation4], 0
    // Predicated region
    $region2: #{tpu_custom_call.1} parent=1 // pred_check
      _
    $region3: #{tpu_custom_call.1} parent=1 // pred_check_branch
      %18 = sbr.rel (0) target = $region5
    $region4: #{tpu_custom_call.1} parent=1 // pred_region
      %s20 = ssub.s32 1024, 1024
      %21 = vsyncadd [#allocation3], %s20
      %s22 = sshll.u32 [#allocation2], 4
      %s23 = int_to_ptr.vmem [resolvable:$true] %s22
      %28 = dma.hbm_to_vmem [thread:$0]  %s0, 1024, %s23, [#allocation3], 512, 512, 32
    $region5: #{tpu_custom_call.1} parent=1 // pred_fallthru
      _
    // Predicated region
    $region6: #{tpu_custom_call.1} parent=1 // pred_check
      _
    $region7: #{tpu_custom_call.1} parent=1 // pred_check_branch
      %30 = sbr.rel (0) target = $region9
    $region8: #{tpu_custom_call.1} parent=1 // pred_region
      %s32 = ssub.s32 1024, 1024
      %33 = vsyncadd [#allocation6], %s32
      %s34 = sshll.u32 [#allocation5], 4
      %s35 = int_to_ptr.vmem [resolvable:$true] %s34
      %40 = dma.hbm_to_vmem [thread:$0]  %s1, 1024, %s35, [#allocation6], 512, 512, 32
    $region9: #{tpu_custom_call.1} parent=1 // pred_fallthru
      _
    // Predicated region
    $region10: #{tpu_custom_call.1} parent=1 // pred_check
      _
    $region11: #{tpu_custom_call.1} parent=1 // pred_check_branch
      %42 = sbr.rel (0) target = $region13
    $region12: #{tpu_custom_call.1} parent=1 // pred_region
      %s44 = ssub.s32 16384, 16384
      %45 = vsyncadd [#allocation6], %s44
      %s46 = sshll.u32 [#allocation7], 4
      %s47 = int_to_ptr.vmem [resolvable:$true] %s46
      %52 = dma.hbm_to_vmem [thread:$0]  %s2, 16384, %s47, [#allocation6], 256, 256, 16
    $region13: #{tpu_custom_call.1} parent=1 // pred_fallthru
      _
    // Predicated region
    $region14: #{tpu_custom_call.1} parent=1 // pred_check
      _
    $region15: #{tpu_custom_call.1} parent=1 // pred_check_branch
      %54 = sbr.rel (0) target = $region17
    $region16: #{tpu_custom_call.1} parent=1 // pred_region
      _
    $region17: #{tpu_custom_call.1} parent=1 // pred_fallthru
      _
    // Predicated region
    $region18: #{tpu_custom_call.1} parent=1 // pred_check
      _
    $region19: #{tpu_custom_call.1} parent=1 // pred_check_branch
      %56 = sbr.rel (0) target = $region21
    $region20: #{tpu_custom_call.1} parent=1 // pred_region
      %s58 = ssub.s32 8192, 8192
      %59 = vsyncadd [#allocation9], %s58
      %s60 = sshll.u32 [#allocation8], 4
      %s61 = int_to_ptr.vmem [resolvable:$true] %s60
      %66 = dma.hbm_to_vmem [thread:$0]  %s4, 8192, %s61, [#allocation9], 128, 128, 8
    $region21: #{tpu_custom_call.1} parent=1 // pred_fallthru
      _
    // Predicated region
    $region22: #{tpu_custom_call.1} parent=1 // pred_check
      _
    $region23: #{tpu_custom_call.1} parent=1 // pred_check_branch
      %68 = sbr.rel (0) target = $region25
    $region24: #{tpu_custom_call.1} parent=1 // pred_region
      _
    $region25: #{tpu_custom_call.1} parent=1 // pred_fallthru
      _
    // Predicated region
    $region26: #{tpu_custom_call.1} parent=1 // pred_check
      _
    $region27: #{tpu_custom_call.1} parent=1 // pred_check_branch
      %70 = sbr.rel (0) target = $region29
    $region28: #{tpu_custom_call.1} parent=1 // pred_region
      %s72 = ssub.s32 2048, 2048
      %73 = vsyncadd [#allocation9], %s72
      %s74 = sshll.u32 [#allocation10], 4
      %s75 = int_to_ptr.vmem [resolvable:$true] %s74
      %80 = dma.hbm_to_vmem [thread:$0]  %s6, 2048, %s75, [#allocation9], 64, 64, 4
    $region29: #{tpu_custom_call.1} parent=1 // pred_fallthru
      _
    // Predicated region
    $region30: #{tpu_custom_call.1} parent=1 // pred_check
      _
    $region31: #{tpu_custom_call.1} parent=1 // pred_check_branch
      %82 = sbr.rel (0) target = $region33
    $region32: #{tpu_custom_call.1} parent=1 // pred_region
      _
    $region33: #{tpu_custom_call.1} parent=1 // pred_fallthru
      _
    // Predicated region
    $region34: #{tpu_custom_call.1} parent=1 // pred_check
      _
    $region35: #{tpu_custom_call.1} parent=1 // pred_check_branch
      %84 = sbr.rel (0) target = $region37
    $region36: #{tpu_custom_call.1} parent=1 // pred_region
      %85 = dma.done [#allocation3], 1024
    $region37: #{tpu_custom_call.1} parent=1 // pred_fallthru
      _
    // Predicated region
    $region38: #{tpu_custom_call.1} parent=1 // pred_check
      _
    $region39: #{tpu_custom_call.1} parent=1 // pred_check_branch
      %87 = sbr.rel (0) target = $region41
    $region40: #{tpu_custom_call.1} parent=1 // pred_region
      %88 = dma.done [#allocation6], 1024
    $region41: #{tpu_custom_call.1} parent=1 // pred_fallthru
      _
    // Predicated region
    $region42: #{tpu_custom_call.1} parent=1 // pred_check
      _
    $region43: #{tpu_custom_call.1} parent=1 // pred_check_branch
      %90 = sbr.rel (0) target = $region45
    $region44: #{tpu_custom_call.1} parent=1 // pred_region
      %91 = dma.done [#allocation6], 16384
    $region45: #{tpu_custom_call.1} parent=1 // pred_fallthru
      _
    // Predicated region
    $region46: #{tpu_custom_call.1} parent=1 // pred_check
      _
    $region47: #{tpu_custom_call.1} parent=1 // pred_check_branch
      %93 = sbr.rel (0) target = $region49
    $region48: #{tpu_custom_call.1} parent=1 // pred_region
      %94 = dma.done [#allocation9], 8192
    $region49: #{tpu_custom_call.1} parent=1 // pred_fallthru
      _
    // Predicated region
    $region50: #{tpu_custom_call.1} parent=1 // pred_check
      _
    $region51: #{tpu_custom_call.1} parent=1 // pred_check_branch
      %96 = sbr.rel (0) target = $region53
    $region52: #{tpu_custom_call.1} parent=1 // pred_region
      %97 = dma.done [#allocation9], 2048
    $region53: #{tpu_custom_call.1} parent=1 // pred_fallthru
      _
    %v99 = vld [vmem:[#allocation7] sm:$0xff]
    %v100 = vld [vmem:[#allocation7 + $0x8] sm:$0xff]
    %v101 = vld [vmem:[#allocation7 + $0x10] sm:$0xff]
    %v102 = vld [vmem:[#allocation7 + $0x18] sm:$0xff]
    %v103 = vld [vmem:[#allocation7 + $0x20] sm:$0xff]
    %v104 = vld [vmem:[#allocation7 + $0x28] sm:$0xff]
    %v105 = vld [vmem:[#allocation7 + $0x30] sm:$0xff]
    %v106 = vld [vmem:[#allocation7 + $0x38] sm:$0xff]
    %v107 = vld [vmem:[#allocation7 + $0x40] sm:$0xff]
    %v108 = vld [vmem:[#allocation7 + $0x48] sm:$0xff]
    %v109 = vld [vmem:[#allocation7 + $0x50] sm:$0xff]
    %v110 = vld [vmem:[#allocation7 + $0x58] sm:$0xff]
    %v111 = vld [vmem:[#allocation7 + $0x60] sm:$0xff]
    %v112 = vld [vmem:[#allocation7 + $0x68] sm:$0xff]
    %v113 = vld [vmem:[#allocation7 + $0x70] sm:$0xff]
    %v114 = vld [vmem:[#allocation7 + $0x78] sm:$0xff]
    %v115 = vld [vmem:[#allocation7 + $0x80] sm:$0xff]
    %v116 = vld [vmem:[#allocation7 + $0x88] sm:$0xff]
    %v117 = vld [vmem:[#allocation7 + $0x90] sm:$0xff]
    %v118 = vld [vmem:[#allocation7 + $0x98] sm:$0xff]
    %v119 = vld [vmem:[#allocation7 + $0xa0] sm:$0xff]
    %v120 = vld [vmem:[#allocation7 + $0xa8] sm:$0xff]
    %v121 = vld [vmem:[#allocation7 + $0xb0] sm:$0xff]
    %v122 = vld [vmem:[#allocation7 + $0xb8] sm:$0xff]
    %v123 = vld [vmem:[#allocation7 + $0xc0] sm:$0xff]
    %v124 = vld [vmem:[#allocation7 + $0xc8] sm:$0xff]
    %v125 = vld [vmem:[#allocation7 + $0xd0] sm:$0xff]
    %v126 = vld [vmem:[#allocation7 + $0xd8] sm:$0xff]
    %v127 = vld [vmem:[#allocation7 + $0xe0] sm:$0xff]
    %v128 = vld [vmem:[#allocation7 + $0xe8] sm:$0xff]
    %v129 = vld [vmem:[#allocation7 + $0xf0] sm:$0xff]
    %v130 = vld [vmem:[#allocation7 + $0xf8] sm:$0xff]
    %v131 = vld [vmem:[#allocation7 + $0x100] sm:$0xff]
    %v132 = vld [vmem:[#allocation7 + $0x108] sm:$0xff]
    %v133 = vld [vmem:[#allocation7 + $0x110] sm:$0xff]
    %v134 = vld [vmem:[#allocation7 + $0x118] sm:$0xff]
    %v135 = vld [vmem:[#allocation7 + $0x120] sm:$0xff]
    %v136 = vld [vmem:[#allocation7 + $0x128] sm:$0xff]
    %v137 = vld [vmem:[#allocation7 + $0x130] sm:$0xff]
    %v138 = vld [vmem:[#allocation7 + $0x138] sm:$0xff]
    %v139 = vld [vmem:[#allocation7 + $0x140] sm:$0xff]
    %v140 = vld [vmem:[#allocation7 + $0x148] sm:$0xff]
    %v141 = vld [vmem:[#allocation7 + $0x150] sm:$0xff]
    %v142 = vld [vmem:[#allocation7 + $0x158] sm:$0xff]
    %v143 = vld [vmem:[#allocation7 + $0x160] sm:$0xff]
    %v144 = vld [vmem:[#allocation7 + $0x168] sm:$0xff]
    %v145 = vld [vmem:[#allocation7 + $0x170] sm:$0xff]
    %v146 = vld [vmem:[#allocation7 + $0x178] sm:$0xff]
    %v147 = vld [vmem:[#allocation7 + $0x180] sm:$0xff]
    %v148 = vld [vmem:[#allocation7 + $0x188] sm:$0xff]
    %v149 = vld [vmem:[#allocation7 + $0x190] sm:$0xff]
    %v150 = vld [vmem:[#allocation7 + $0x198] sm:$0xff]
    %v151 = vld [vmem:[#allocation7 + $0x1a0] sm:$0xff]
    %v152 = vld [vmem:[#allocation7 + $0x1a8] sm:$0xff]
    %v153 = vld [vmem:[#allocation7 + $0x1b0] sm:$0xff]
    %v154 = vld [vmem:[#allocation7 + $0x1b8] sm:$0xff]
    %v155 = vld [vmem:[#allocation7 + $0x1c0] sm:$0xff]
    %v156 = vld [vmem:[#allocation7 + $0x1c8] sm:$0xff]
    %v157 = vld [vmem:[#allocation7 + $0x1d0] sm:$0xff]
    %v158 = vld [vmem:[#allocation7 + $0x1d8] sm:$0xff]
    %v159 = vld [vmem:[#allocation7 + $0x1e0] sm:$0xff]
    %v160 = vld [vmem:[#allocation7 + $0x1e8] sm:$0xff]
    %v161 = vld [vmem:[#allocation7 + $0x1f0] sm:$0xff]
    %v162 = vld [vmem:[#allocation7 + $0x1f8] sm:$0xff]
    %v163 = vld [vmem:[#allocation7 + $0x200] sm:$0xff]
    %v164 = vld [vmem:[#allocation7 + $0x208] sm:$0xff]
    %v165 = vld [vmem:[#allocation7 + $0x210] sm:$0xff]
    %v166 = vld [vmem:[#allocation7 + $0x218] sm:$0xff]
    %v167 = vld [vmem:[#allocation7 + $0x220] sm:$0xff]
    %v168 = vld [vmem:[#allocation7 + $0x228] sm:$0xff]
    %v169 = vld [vmem:[#allocation7 + $0x230] sm:$0xff]
    %v170 = vld [vmem:[#allocation7 + $0x238] sm:$0xff]
    %v171 = vld [vmem:[#allocation7 + $0x240] sm:$0xff]
    %v172 = vld [vmem:[#allocation7 + $0x248] sm:$0xff]
    %v173 = vld [vmem:[#allocation7 + $0x250] sm:$0xff]
    %v174 = vld [vmem:[#allocation7 + $0x258] sm:$0xff]
    %v175 = vld [vmem:[#allocation7 + $0x260] sm:$0xff]
    %v176 = vld [vmem:[#allocation7 + $0x268] sm:$0xff]
    %v177 = vld [vmem:[#allocation7 + $0x270] sm:$0xff]
    %v178 = vld [vmem:[#allocation7 + $0x278] sm:$0xff]
    %v179 = vld [vmem:[#allocation7 + $0x280] sm:$0xff]
    %v180 = vld [vmem:[#allocation7 + $0x288] sm:$0xff]
    %v181 = vld [vmem:[#allocation7 + $0x290] sm:$0xff]
    %v182 = vld [vmem:[#allocation7 + $0x298] sm:$0xff]
    %v183 = vld [vmem:[#allocation7 + $0x2a0] sm:$0xff]
    %v184 = vld [vmem:[#allocation7 + $0x2a8] sm:$0xff]
    %v185 = vld [vmem:[#allocation7 + $0x2b0] sm:$0xff]
    %v186 = vld [vmem:[#allocation7 + $0x2b8] sm:$0xff]
    %v187 = vld [vmem:[#allocation7 + $0x2c0] sm:$0xff]
    %v188 = vld [vmem:[#allocation7 + $0x2c8] sm:$0xff]
    %v189 = vld [vmem:[#allocation7 + $0x2d0] sm:$0xff]
    %v190 = vld [vmem:[#allocation7 + $0x2d8] sm:$0xff]
    %v191 = vld [vmem:[#allocation7 + $0x2e0] sm:$0xff]
    %v192 = vld [vmem:[#allocation7 + $0x2e8] sm:$0xff]
    %v193 = vld [vmem:[#allocation7 + $0x2f0] sm:$0xff]
    %v194 = vld [vmem:[#allocation7 + $0x2f8] sm:$0xff]
    %v195 = vld [vmem:[#allocation7 + $0x300] sm:$0xff]
    %v196 = vld [vmem:[#allocation7 + $0x308] sm:$0xff]
    %v197 = vld [vmem:[#allocation7 + $0x310] sm:$0xff]
    %v198 = vld [vmem:[#allocation7 + $0x318] sm:$0xff]
    %v199 = vld [vmem:[#allocation7 + $0x320] sm:$0xff]
    %v200 = vld [vmem:[#allocation7 + $0x328] sm:$0xff]
    %v201 = vld [vmem:[#allocation7 + $0x330] sm:$0xff]
    %v202 = vld [vmem:[#allocation7 + $0x338] sm:$0xff]
    %v203 = vld [vmem:[#allocation7 + $0x340] sm:$0xff]
    %v204 = vld [vmem:[#allocation7 + $0x348] sm:$0xff]
    %v205 = vld [vmem:[#allocation7 + $0x350] sm:$0xff]
    %v206 = vld [vmem:[#allocation7 + $0x358] sm:$0xff]
    %v207 = vld [vmem:[#allocation7 + $0x360] sm:$0xff]
    %v208 = vld [vmem:[#allocation7 + $0x368] sm:$0xff]
    %v209 = vld [vmem:[#allocation7 + $0x370] sm:$0xff]
    %v210 = vld [vmem:[#allocation7 + $0x378] sm:$0xff]
    %v211 = vld [vmem:[#allocation7 + $0x380] sm:$0xff]
    %v212 = vld [vmem:[#allocation7 + $0x388] sm:$0xff]
    %v213 = vld [vmem:[#allocation7 + $0x390] sm:$0xff]
    %v214 = vld [vmem:[#allocation7 + $0x398] sm:$0xff]
    %v215 = vld [vmem:[#allocation7 + $0x3a0] sm:$0xff]
    %v216 = vld [vmem:[#allocation7 + $0x3a8] sm:$0xff]
    %v217 = vld [vmem:[#allocation7 + $0x3b0] sm:$0xff]
    %v218 = vld [vmem:[#allocation7 + $0x3b8] sm:$0xff]
    %v219 = vld [vmem:[#allocation7 + $0x3c0] sm:$0xff]
    %v220 = vld [vmem:[#allocation7 + $0x3c8] sm:$0xff]
    %v221 = vld [vmem:[#allocation7 + $0x3d0] sm:$0xff]
    %v222 = vld [vmem:[#allocation7 + $0x3d8] sm:$0xff]
    %v223 = vld [vmem:[#allocation7 + $0x3e0] sm:$0xff]
    %v224 = vld [vmem:[#allocation7 + $0x3e8] sm:$0xff]
    %v225 = vld [vmem:[#allocation7 + $0x3f0] sm:$0xff]
    %v226 = vld [vmem:[#allocation7 + $0x3f8] sm:$0xff]
    %v227 = vld [vmem:[%s3] sm:$0xf]
    %v228 = vld [vmem:[#allocation2] sm:$0xff]
    %v229 = vld [vmem:[#allocation2 + $0x8] sm:$0xff]
    %v230 = vld [vmem:[#allocation2 + $0x10] sm:$0xff]
    %v231 = vld [vmem:[#allocation2 + $0x18] sm:$0xff]
    %v232 = vld [vmem:[#allocation2 + $0x20] sm:$0xff]
    %v233 = vld [vmem:[#allocation2 + $0x28] sm:$0xff]
    %v234 = vld [vmem:[#allocation2 + $0x30] sm:$0xff]
    %v235 = vld [vmem:[#allocation2 + $0x38] sm:$0xff]
    %v236 = vpack.c.bf16 %v232, %v228
    %v237 = vpack.c.bf16 %v233, %v229
    %v238 = vpack.c.bf16 %v234, %v230
    %v239 = vpack.c.bf16 %v235, %v231
    %v240 = vld [vmem:[#allocation5] sm:$0xff]
    %v241 = vld [vmem:[#allocation5 + $0x8] sm:$0xff]
    %v242 = vld [vmem:[#allocation5 + $0x10] sm:$0xff]
    %v243 = vld [vmem:[#allocation5 + $0x18] sm:$0xff]
    %v244 = vld [vmem:[#allocation5 + $0x20] sm:$0xff]
    %v245 = vld [vmem:[#allocation5 + $0x28] sm:$0xff]
    %v246 = vld [vmem:[#allocation5 + $0x30] sm:$0xff]
    %v247 = vld [vmem:[#allocation5 + $0x38] sm:$0xff]
    %v248 = vpack.c.bf16 %v244, %v240
    %v249 = vpack.c.bf16 %v245, %v241
    %v250 = vpack.c.bf16 %v246, %v242
    %v251 = vpack.c.bf16 %v247, %v243
    %v253 = vlaneseq
    %v254 = vshrl.u32 %v253, 7
    %v255 = vsub.s32 0, %v254
    %v256 = vrot.slane %v227, %v255
    %v257 = vlaneseq
    %v258 = vshrl.u32 %v257, 7
    %v259 = vsub.s32 1, %v258
    %v260 = vrot.slane %v227, %v259
    %v261 = vlaneseq
    %v262 = vshrl.u32 %v261, 7
    %v263 = vsub.s32 2, %v262
    %v264 = vrot.slane %v227, %v263
    %v265 = vlaneseq
    %v266 = vshrl.u32 %v265, 7
    %v267 = vsub.s32 3, %v266
    %v268 = vrot.slane %v227, %v267
    %v401 = vunpack.c.l.b16 %v99
    %v402 = vunpack.c.h.b16 %v99
    %v403 = vunpack.c.l.b16 %v100
    %v404 = vunpack.c.h.b16 %v100
    %v405 = vunpack.c.l.b16 %v101
    %v406 = vunpack.c.h.b16 %v101
    %v407 = vunpack.c.l.b16 %v102
    %v408 = vunpack.c.h.b16 %v102
    %v409 = vunpack.c.l.b16 %v103
    %v410 = vunpack.c.h.b16 %v103
    %v411 = vunpack.c.l.b16 %v104
    %v412 = vunpack.c.h.b16 %v104
    %v413 = vunpack.c.l.b16 %v105
    %v414 = vunpack.c.h.b16 %v105
    %v415 = vunpack.c.l.b16 %v106
    %v416 = vunpack.c.h.b16 %v106
    %v417 = vunpack.c.l.b16 %v107
    %v418 = vunpack.c.h.b16 %v107
    %v419 = vunpack.c.l.b16 %v108
    %v420 = vunpack.c.h.b16 %v108
    %v421 = vunpack.c.l.b16 %v109
    %v422 = vunpack.c.h.b16 %v109
    %v423 = vunpack.c.l.b16 %v110
    %v424 = vunpack.c.h.b16 %v110
    %v425 = vunpack.c.l.b16 %v111
    %v426 = vunpack.c.h.b16 %v111
    %v427 = vunpack.c.l.b16 %v112
    %v428 = vunpack.c.h.b16 %v112
    %v429 = vunpack.c.l.b16 %v113
    %v430 = vunpack.c.h.b16 %v113
    %v431 = vunpack.c.l.b16 %v114
    %v432 = vunpack.c.h.b16 %v114
    %v433 = vunpack.c.l.b16 %v115
    %v434 = vunpack.c.h.b16 %v115
    %v435 = vunpack.c.l.b16 %v116
    %v436 = vunpack.c.h.b16 %v116
    %v437 = vunpack.c.l.b16 %v117
    %v438 = vunpack.c.h.b16 %v117
    %v439 = vunpack.c.l.b16 %v118
    %v440 = vunpack.c.h.b16 %v118
    %v441 = vunpack.c.l.b16 %v119
    %v442 = vunpack.c.h.b16 %v119
    %v443 = vunpack.c.l.b16 %v120
    %v444 = vunpack.c.h.b16 %v120
    %v445 = vunpack.c.l.b16 %v121
    %v446 = vunpack.c.h.b16 %v121
    %v447 = vunpack.c.l.b16 %v122
    %v448 = vunpack.c.h.b16 %v122
    %v449 = vunpack.c.l.b16 %v123
    %v450 = vunpack.c.h.b16 %v123
    %v451 = vunpack.c.l.b16 %v124
    %v452 = vunpack.c.h.b16 %v124
    %v453 = vunpack.c.l.b16 %v125
    %v454 = vunpack.c.h.b16 %v125
    %v455 = vunpack.c.l.b16 %v126
    %v456 = vunpack.c.h.b16 %v126
    %v457 = vunpack.c.l.b16 %v127
    %v458 = vunpack.c.h.b16 %v127
    %v459 = vunpack.c.l.b16 %v128
    %v460 = vunpack.c.h.b16 %v128
    %v461 = vunpack.c.l.b16 %v129
    %v462 = vunpack.c.h.b16 %v129
    %v463 = vunpack.c.l.b16 %v130
    %v464 = vunpack.c.h.b16 %v130
    %v465 = vunpack.c.l.b16 %v131
    %v466 = vunpack.c.h.b16 %v131
    %v467 = vunpack.c.l.b16 %v132
    %v468 = vunpack.c.h.b16 %v132
    %v469 = vunpack.c.l.b16 %v133
    %v470 = vunpack.c.h.b16 %v133
    %v471 = vunpack.c.l.b16 %v134
    %v472 = vunpack.c.h.b16 %v134
    %v473 = vunpack.c.l.b16 %v135
    %v474 = vunpack.c.h.b16 %v135
    %v475 = vunpack.c.l.b16 %v136
    %v476 = vunpack.c.h.b16 %v136
    %v477 = vunpack.c.l.b16 %v137
    %v478 = vunpack.c.h.b16 %v137
    %v479 = vunpack.c.l.b16 %v138
    %v480 = vunpack.c.h.b16 %v138
    %v481 = vunpack.c.l.b16 %v139
    %v482 = vunpack.c.h.b16 %v139
    %v483 = vunpack.c.l.b16 %v140
    %v484 = vunpack.c.h.b16 %v140
    %v485 = vunpack.c.l.b16 %v141
    %v486 = vunpack.c.h.b16 %v141
    %v487 = vunpack.c.l.b16 %v142
    %v488 = vunpack.c.h.b16 %v142
    %v489 = vunpack.c.l.b16 %v143
    %v490 = vunpack.c.h.b16 %v143
    %v491 = vunpack.c.l.b16 %v144
    %v492 = vunpack.c.h.b16 %v144
    %v493 = vunpack.c.l.b16 %v145
    %v494 = vunpack.c.h.b16 %v145
    %v495 = vunpack.c.l.b16 %v146
    %v496 = vunpack.c.h.b16 %v146
    %v497 = vunpack.c.l.b16 %v147
    %v498 = vunpack.c.h.b16 %v147
    %v499 = vunpack.c.l.b16 %v148
    %v500 = vunpack.c.h.b16 %v148
    %v501 = vunpack.c.l.b16 %v149
    %v502 = vunpack.c.h.b16 %v149
    %v503 = vunpack.c.l.b16 %v150
    %v504 = vunpack.c.h.b16 %v150
    %v505 = vunpack.c.l.b16 %v151
    %v506 = vunpack.c.h.b16 %v151
    %v507 = vunpack.c.l.b16 %v152
    %v508 = vunpack.c.h.b16 %v152
    %v509 = vunpack.c.l.b16 %v153
    %v510 = vunpack.c.h.b16 %v153
    %v511 = vunpack.c.l.b16 %v154
    %v512 = vunpack.c.h.b16 %v154
    %v513 = vunpack.c.l.b16 %v155
    %v514 = vunpack.c.h.b16 %v155
    %v515 = vunpack.c.l.b16 %v156
    %v516 = vunpack.c.h.b16 %v156
    %v517 = vunpack.c.l.b16 %v157
    %v518 = vunpack.c.h.b16 %v157
    %v519 = vunpack.c.l.b16 %v158
    %v520 = vunpack.c.h.b16 %v158
    %v521 = vunpack.c.l.b16 %v159
    %v522 = vunpack.c.h.b16 %v159
    %v523 = vunpack.c.l.b16 %v160
    %v524 = vunpack.c.h.b16 %v160
    %v525 = vunpack.c.l.b16 %v161
    %v526 = vunpack.c.h.b16 %v161
    %v527 = vunpack.c.l.b16 %v162
    %v528 = vunpack.c.h.b16 %v162
    %v529 = vunpack.c.l.b16 %v163
    %v530 = vunpack.c.h.b16 %v163
    %v531 = vunpack.c.l.b16 %v164
    %v532 = vunpack.c.h.b16 %v164
    %v533 = vunpack.c.l.b16 %v165
    %v534 = vunpack.c.h.b16 %v165
    %v535 = vunpack.c.l.b16 %v166
    %v536 = vunpack.c.h.b16 %v166
    %v537 = vunpack.c.l.b16 %v167
    %v538 = vunpack.c.h.b16 %v167
    %v539 = vunpack.c.l.b16 %v168
    %v540 = vunpack.c.h.b16 %v168
    %v541 = vunpack.c.l.b16 %v169
    %v542 = vunpack.c.h.b16 %v169
    %v543 = vunpack.c.l.b16 %v170
    %v544 = vunpack.c.h.b16 %v170
    %v545 = vunpack.c.l.b16 %v171
    %v546 = vunpack.c.h.b16 %v171
    %v547 = vunpack.c.l.b16 %v172
    %v548 = vunpack.c.h.b16 %v172
    %v549 = vunpack.c.l.b16 %v173
    %v550 = vunpack.c.h.b16 %v173
    %v551 = vunpack.c.l.b16 %v174
    %v552 = vunpack.c.h.b16 %v174
    %v553 = vunpack.c.l.b16 %v175
    %v554 = vunpack.c.h.b16 %v175
    %v555 = vunpack.c.l.b16 %v176
    %v556 = vunpack.c.h.b16 %v176
    %v557 = vunpack.c.l.b16 %v177
    %v558 = vunpack.c.h.b16 %v177
    %v559 = vunpack.c.l.b16 %v178
    %v560 = vunpack.c.h.b16 %v178
    %v561 = vunpack.c.l.b16 %v179
    %v562 = vunpack.c.h.b16 %v179
    %v563 = vunpack.c.l.b16 %v180
    %v564 = vunpack.c.h.b16 %v180
    %v565 = vunpack.c.l.b16 %v181
    %v566 = vunpack.c.h.b16 %v181
    %v567 = vunpack.c.l.b16 %v182
    %v568 = vunpack.c.h.b16 %v182
    %v569 = vunpack.c.l.b16 %v183
    %v570 = vunpack.c.h.b16 %v183
    %v571 = vunpack.c.l.b16 %v184
    %v572 = vunpack.c.h.b16 %v184
    %v573 = vunpack.c.l.b16 %v185
    %v574 = vunpack.c.h.b16 %v185
    %v575 = vunpack.c.l.b16 %v186
    %v576 = vunpack.c.h.b16 %v186
    %v577 = vunpack.c.l.b16 %v187
    %v578 = vunpack.c.h.b16 %v187
    %v579 = vunpack.c.l.b16 %v188
    %v580 = vunpack.c.h.b16 %v188
    %v581 = vunpack.c.l.b16 %v189
    %v582 = vunpack.c.h.b16 %v189
    %v583 = vunpack.c.l.b16 %v190
    %v584 = vunpack.c.h.b16 %v190
    %v585 = vunpack.c.l.b16 %v191
    %v586 = vunpack.c.h.b16 %v191
    %v587 = vunpack.c.l.b16 %v192
    %v588 = vunpack.c.h.b16 %v192
    %v589 = vunpack.c.l.b16 %v193
    %v590 = vunpack.c.h.b16 %v193
    %v591 = vunpack.c.l.b16 %v194
    %v592 = vunpack.c.h.b16 %v194
    %v593 = vunpack.c.l.b16 %v195
    %v594 = vunpack.c.h.b16 %v195
    %v595 = vunpack.c.l.b16 %v196
    %v596 = vunpack.c.h.b16 %v196
    %v597 = vunpack.c.l.b16 %v197
    %v598 = vunpack.c.h.b16 %v197
    %v599 = vunpack.c.l.b16 %v198
    %v600 = vunpack.c.h.b16 %v198
    %v601 = vunpack.c.l.b16 %v199
    %v602 = vunpack.c.h.b16 %v199
    %v603 = vunpack.c.l.b16 %v200
    %v604 = vunpack.c.h.b16 %v200
    %v605 = vunpack.c.l.b16 %v201
    %v606 = vunpack.c.h.b16 %v201
    %v607 = vunpack.c.l.b16 %v202
    %v608 = vunpack.c.h.b16 %v202
    %v609 = vunpack.c.l.b16 %v203
    %v610 = vunpack.c.h.b16 %v203
    %v611 = vunpack.c.l.b16 %v204
    %v612 = vunpack.c.h.b16 %v204
    %v613 = vunpack.c.l.b16 %v205
    %v614 = vunpack.c.h.b16 %v205
    %v615 = vunpack.c.l.b16 %v206
    %v616 = vunpack.c.h.b16 %v206
    %v617 = vunpack.c.l.b16 %v207
    %v618 = vunpack.c.h.b16 %v207
    %v619 = vunpack.c.l.b16 %v208
    %v620 = vunpack.c.h.b16 %v208
    %v621 = vunpack.c.l.b16 %v209
    %v622 = vunpack.c.h.b16 %v209
    %v623 = vunpack.c.l.b16 %v210
    %v624 = vunpack.c.h.b16 %v210
    %v625 = vunpack.c.l.b16 %v211
    %v626 = vunpack.c.h.b16 %v211
    %v627 = vunpack.c.l.b16 %v212
    %v628 = vunpack.c.h.b16 %v212
    %v629 = vunpack.c.l.b16 %v213
    %v630 = vunpack.c.h.b16 %v213
    %v631 = vunpack.c.l.b16 %v214
    %v632 = vunpack.c.h.b16 %v214
    %v633 = vunpack.c.l.b16 %v215
    %v634 = vunpack.c.h.b16 %v215
    %v635 = vunpack.c.l.b16 %v216
    %v636 = vunpack.c.h.b16 %v216
    %v637 = vunpack.c.l.b16 %v217
    %v638 = vunpack.c.h.b16 %v217
    %v639 = vunpack.c.l.b16 %v218
    %v640 = vunpack.c.h.b16 %v218
    %v641 = vunpack.c.l.b16 %v219
    %v642 = vunpack.c.h.b16 %v219
    %v643 = vunpack.c.l.b16 %v220
    %v644 = vunpack.c.h.b16 %v220
    %v645 = vunpack.c.l.b16 %v221
    %v646 = vunpack.c.h.b16 %v221
    %v647 = vunpack.c.l.b16 %v222
    %v648 = vunpack.c.h.b16 %v222
    %v649 = vunpack.c.l.b16 %v223
    %v650 = vunpack.c.h.b16 %v223
    %v651 = vunpack.c.l.b16 %v224
    %v652 = vunpack.c.h.b16 %v224
    %v653 = vunpack.c.l.b16 %v225
    %v654 = vunpack.c.h.b16 %v225
    %v655 = vunpack.c.l.b16 %v226
    %v656 = vunpack.c.h.b16 %v226
    %v657 = vpack.c.b16 %v405, %v401
    %v658 = vpack.c.b16 %v406, %v402
    %v659 = vpack.c.b16 %v407, %v403
    %v660 = vpack.c.b16 %v408, %v404
    %v661 = vpack.c.b16 %v413, %v409
    %v662 = vpack.c.b16 %v414, %v410
    %v663 = vpack.c.b16 %v415, %v411
    %v664 = vpack.c.b16 %v416, %v412
    %v665 = vpack.c.b16 %v421, %v417
    %v666 = vpack.c.b16 %v422, %v418
    %v667 = vpack.c.b16 %v423, %v419
    %v668 = vpack.c.b16 %v424, %v420
    %v669 = vpack.c.b16 %v429, %v425
    %v670 = vpack.c.b16 %v430, %v426
    %v671 = vpack.c.b16 %v431, %v427
    %v672 = vpack.c.b16 %v432, %v428
    %v673 = vpack.c.b16 %v437, %v433
    %v674 = vpack.c.b16 %v438, %v434
    %v675 = vpack.c.b16 %v439, %v435
    %v676 = vpack.c.b16 %v440, %v436
    %v677 = vpack.c.b16 %v445, %v441
    %v678 = vpack.c.b16 %v446, %v442
    %v679 = vpack.c.b16 %v447, %v443
    %v680 = vpack.c.b16 %v448, %v444
    %v681 = vpack.c.b16 %v453, %v449
    %v682 = vpack.c.b16 %v454, %v450
    %v683 = vpack.c.b16 %v455, %v451
    %v684 = vpack.c.b16 %v456, %v452
    %v685 = vpack.c.b16 %v461, %v457
    %v686 = vpack.c.b16 %v462, %v458
    %v687 = vpack.c.b16 %v463, %v459
    %v688 = vpack.c.b16 %v464, %v460
    %v689 = vpack.c.b16 %v469, %v465
    %v690 = vpack.c.b16 %v470, %v466
    %v691 = vpack.c.b16 %v471, %v467
    %v692 = vpack.c.b16 %v472, %v468
    %v693 = vpack.c.b16 %v477, %v473
    %v694 = vpack.c.b16 %v478, %v474
    %v695 = vpack.c.b16 %v479, %v475
    %v696 = vpack.c.b16 %v480, %v476
    %v697 = vpack.c.b16 %v485, %v481
    %v698 = vpack.c.b16 %v486, %v482
    %v699 = vpack.c.b16 %v487, %v483
    %v700 = vpack.c.b16 %v488, %v484
    %v701 = vpack.c.b16 %v493, %v489
    %v702 = vpack.c.b16 %v494, %v490
    %v703 = vpack.c.b16 %v495, %v491
    %v704 = vpack.c.b16 %v496, %v492
    %v705 = vpack.c.b16 %v501, %v497
    %v706 = vpack.c.b16 %v502, %v498
    %v707 = vpack.c.b16 %v503, %v499
    %v708 = vpack.c.b16 %v504, %v500
    %v709 = vpack.c.b16 %v509, %v505
    %v710 = vpack.c.b16 %v510, %v506
    %v711 = vpack.c.b16 %v511, %v507
    %v712 = vpack.c.b16 %v512, %v508
    %v713 = vpack.c.b16 %v517, %v513
    %v714 = vpack.c.b16 %v518, %v514
    %v715 = vpack.c.b16 %v519, %v515
    %v716 = vpack.c.b16 %v520, %v516
    %v717 = vpack.c.b16 %v525, %v521
    %v718 = vpack.c.b16 %v526, %v522
    %v719 = vpack.c.b16 %v527, %v523
    %v720 = vpack.c.b16 %v528, %v524
    %v721 = vpack.c.b16 %v533, %v529
    %v722 = vpack.c.b16 %v534, %v530
    %v723 = vpack.c.b16 %v535, %v531
    %v724 = vpack.c.b16 %v536, %v532
    %v725 = vpack.c.b16 %v541, %v537
    %v726 = vpack.c.b16 %v542, %v538
    %v727 = vpack.c.b16 %v543, %v539
    %v728 = vpack.c.b16 %v544, %v540
    %v729 = vpack.c.b16 %v549, %v545
    %v730 = vpack.c.b16 %v550, %v546
    %v731 = vpack.c.b16 %v551, %v547
    %v732 = vpack.c.b16 %v552, %v548
    %v733 = vpack.c.b16 %v557, %v553
    %v734 = vpack.c.b16 %v558, %v554
    %v735 = vpack.c.b16 %v559, %v555
    %v736 = vpack.c.b16 %v560, %v556
    %v737 = vpack.c.b16 %v565, %v561
    %v738 = vpack.c.b16 %v566, %v562
    %v739 = vpack.c.b16 %v567, %v563
    %v740 = vpack.c.b16 %v568, %v564
    %v741 = vpack.c.b16 %v573, %v569
    %v742 = vpack.c.b16 %v574, %v570
    %v743 = vpack.c.b16 %v575, %v571
    %v744 = vpack.c.b16 %v576, %v572
    %v745 = vpack.c.b16 %v581, %v577
    %v746 = vpack.c.b16 %v582, %v578
    %v747 = vpack.c.b16 %v583, %v579
    %v748 = vpack.c.b16 %v584, %v580
    %v749 = vpack.c.b16 %v589, %v585
    %v750 = vpack.c.b16 %v590, %v586
    %v751 = vpack.c.b16 %v591, %v587
    %v752 = vpack.c.b16 %v592, %v588
    %v753 = vpack.c.b16 %v597, %v593
    %v754 = vpack.c.b16 %v598, %v594
    %v755 = vpack.c.b16 %v599, %v595
    %v756 = vpack.c.b16 %v600, %v596
    %v757 = vpack.c.b16 %v605, %v601
    %v758 = vpack.c.b16 %v606, %v602
    %v759 = vpack.c.b16 %v607, %v603
    %v760 = vpack.c.b16 %v608, %v604
    %v761 = vpack.c.b16 %v613, %v609
    %v762 = vpack.c.b16 %v614, %v610
    %v763 = vpack.c.b16 %v615, %v611
    %v764 = vpack.c.b16 %v616, %v612
    %v765 = vpack.c.b16 %v621, %v617
    %v766 = vpack.c.b16 %v622, %v618
    %v767 = vpack.c.b16 %v623, %v619
    %v768 = vpack.c.b16 %v624, %v620
    %v769 = vpack.c.b16 %v629, %v625
    %v770 = vpack.c.b16 %v630, %v626
    %v771 = vpack.c.b16 %v631, %v627
    %v772 = vpack.c.b16 %v632, %v628
    %v773 = vpack.c.b16 %v637, %v633
    %v774 = vpack.c.b16 %v638, %v634
    %v775 = vpack.c.b16 %v639, %v635
    %v776 = vpack.c.b16 %v640, %v636
    %v777 = vpack.c.b16 %v645, %v641
    %v778 = vpack.c.b16 %v646, %v642
    %v779 = vpack.c.b16 %v647, %v643
    %v780 = vpack.c.b16 %v648, %v644
    %v781 = vpack.c.b16 %v653, %v649
    %v782 = vpack.c.b16 %v654, %v650
    %v783 = vpack.c.b16 %v655, %v651
    %v784 = vpack.c.b16 %v656, %v652
    %913 = vmatprep.subr.bf16.mxu0 %v686
    %914 = vmatpush1.bf16.msra.mxu0 %v685
    %915 = vmatprep.subr.bf16.mxu0 %v682
    %916 = vmatpush1.bf16.msra.mxu0 %v681
    %917 = vmatprep.subr.bf16.mxu0 %v678
    %918 = vmatpush1.bf16.msra.mxu0 %v677
    %919 = vmatprep.subr.bf16.mxu0 %v674
    %920 = vmatpush1.bf16.msra.mxu0 %v673
    %921 = vmatprep.subr.bf16.mxu0 %v670
    %922 = vmatpush1.bf16.msra.mxu0 %v669
    %923 = vmatprep.subr.bf16.mxu0 %v666
    %924 = vmatpush1.bf16.msra.mxu0 %v665
    %925 = vmatprep.subr.bf16.mxu0 %v662
    %926 = vmatpush1.bf16.msra.mxu0 %v661
    %927 = vmatprep.subr.bf16.mxu0 %v658
    %928 = vmatpush1.bf16.msra.mxu0 %v657
    %929 = vmatprep.subr.bf16.mxu0 %v718
    %930 = vmatpush2.bf16.msra.mxu0 %v717
    %931 = vmatprep.subr.bf16.mxu0 %v714
    %932 = vmatpush2.bf16.msra.mxu0 %v713
    %933 = vmatprep.subr.bf16.mxu0 %v710
    %934 = vmatpush2.bf16.msra.mxu0 %v709
    %935 = vmatprep.subr.bf16.mxu0 %v706
    %936 = vmatpush2.bf16.msra.mxu0 %v705
    %937 = vmatprep.subr.bf16.mxu0 %v702
    %938 = vmatpush2.bf16.msra.mxu0 %v701
    %939 = vmatprep.subr.bf16.mxu0 %v698
    %940 = vmatpush2.bf16.msra.mxu0 %v697
    %941 = vmatprep.subr.bf16.mxu0 %v694
    %942 = vmatpush2.bf16.msra.mxu0 %v693
    %943 = vmatprep.subr.bf16.mxu0 %v690
    %944 = vmatpush2.bf16.msra.mxu0 %v689
    %945 = vmatprep.mubr.bf16.mxu0 %v237
    %946 = vmatmul.mubr.bf16.gmra.mxu0 %v236
    %v947 = vpop.f32.mrf.mxu0
    %v948 = vadd.f32 %v256, %v947
    %v949 = vpop.f32.mrf.mxu0
    %v950 = vadd.f32 %v260, %v949
    %v951 = vpop.f32.mrf.mxu0
    %v952 = vadd.f32 %v256, %v951
    %v953 = vpop.f32.mrf.mxu0
    %v954 = vadd.f32 %v260, %v953
    %955 = vdwg.mxu0
    %956 = vmatprep.subr.bf16.mxu0 %v750
    %957 = vmatpush1.bf16.msra.mxu0 %v749
    %958 = vmatprep.subr.bf16.mxu0 %v746
    %959 = vmatpush1.bf16.msra.mxu0 %v745
    %960 = vmatprep.subr.bf16.mxu0 %v742
    %961 = vmatpush1.bf16.msra.mxu0 %v741
    %962 = vmatprep.subr.bf16.mxu0 %v738
    %963 = vmatpush1.bf16.msra.mxu0 %v737
    %964 = vmatprep.subr.bf16.mxu0 %v734
    %965 = vmatpush1.bf16.msra.mxu0 %v733
    %966 = vmatprep.subr.bf16.mxu0 %v730
    %967 = vmatpush1.bf16.msra.mxu0 %v729
    %968 = vmatprep.subr.bf16.mxu0 %v726
    %969 = vmatpush1.bf16.msra.mxu0 %v725
    %970 = vmatprep.subr.bf16.mxu0 %v722
    %971 = vmatpush1.bf16.msra.mxu0 %v721
    %972 = vmatprep.subr.bf16.mxu0 %v782
    %973 = vmatpush2.bf16.msra.mxu0 %v781
    %974 = vmatprep.subr.bf16.mxu0 %v778
    %975 = vmatpush2.bf16.msra.mxu0 %v777
    %976 = vmatprep.subr.bf16.mxu0 %v774
    %977 = vmatpush2.bf16.msra.mxu0 %v773
    %978 = vmatprep.subr.bf16.mxu0 %v770
    %979 = vmatpush2.bf16.msra.mxu0 %v769
    %980 = vmatprep.subr.bf16.mxu0 %v766
    %981 = vmatpush2.bf16.msra.mxu0 %v765
    %982 = vmatprep.subr.bf16.mxu0 %v762
    %983 = vmatpush2.bf16.msra.mxu0 %v761
    %984 = vmatprep.subr.bf16.mxu0 %v758
    %985 = vmatpush2.bf16.msra.mxu0 %v757
    %986 = vmatprep.subr.bf16.mxu0 %v754
    %987 = vmatpush2.bf16.msra.mxu0 %v753
    %988 = vmatprep.mubr.bf16.mxu0 %v239
    %989 = vmatmul.mubr.bf16.gmra.mxu0 %v238
    %v990 = vpop.f32.mrf.mxu0
    %v991 = vadd.f32 %v948, %v990
    %v992 = vpop.f32.mrf.mxu0
    %v993 = vadd.f32 %v950, %v992
    %v994 = vpop.f32.mrf.mxu0
    %v995 = vadd.f32 %v952, %v994
    %v996 = vpop.f32.mrf.mxu0
    %v997 = vadd.f32 %v954, %v996
    %998 = vdwg.mxu0
    %999 = vmatprep.subr.bf16.mxu0 %v688
    %1000 = vmatpush1.bf16.msra.mxu0 %v687
    %1001 = vmatprep.subr.bf16.mxu0 %v684
    %1002 = vmatpush1.bf16.msra.mxu0 %v683
    %1003 = vmatprep.subr.bf16.mxu0 %v680
    %1004 = vmatpush1.bf16.msra.mxu0 %v679
    %1005 = vmatprep.subr.bf16.mxu0 %v676
    %1006 = vmatpush1.bf16.msra.mxu0 %v675
    %1007 = vmatprep.subr.bf16.mxu0 %v672
    %1008 = vmatpush1.bf16.msra.mxu0 %v671
    %1009 = vmatprep.subr.bf16.mxu0 %v668
    %1010 = vmatpush1.bf16.msra.mxu0 %v667
    %1011 = vmatprep.subr.bf16.mxu0 %v664
    %1012 = vmatpush1.bf16.msra.mxu0 %v663
    %1013 = vmatprep.subr.bf16.mxu0 %v660
    %1014 = vmatpush1.bf16.msra.mxu0 %v659
    %1015 = vmatprep.subr.bf16.mxu0 %v720
    %1016 = vmatpush2.bf16.msra.mxu0 %v719
    %1017 = vmatprep.subr.bf16.mxu0 %v716
    %1018 = vmatpush2.bf16.msra.mxu0 %v715
    %1019 = vmatprep.subr.bf16.mxu0 %v712
    %1020 = vmatpush2.bf16.msra.mxu0 %v711
    %1021 = vmatprep.subr.bf16.mxu0 %v708
    %1022 = vmatpush2.bf16.msra.mxu0 %v707
    %1023 = vmatprep.subr.bf16.mxu0 %v704
    %1024 = vmatpush2.bf16.msra.mxu0 %v703
    %1025 = vmatprep.subr.bf16.mxu0 %v700
    %1026 = vmatpush2.bf16.msra.mxu0 %v699
    %1027 = vmatprep.subr.bf16.mxu0 %v696
    %1028 = vmatpush2.bf16.msra.mxu0 %v695
    %1029 = vmatprep.subr.bf16.mxu0 %v692
    %1030 = vmatpush2.bf16.msra.mxu0 %v691
    %1031 = vmatprep.mubr.bf16.mxu0 %v237
    %1032 = vmatmul.mubr.bf16.gmra.mxu0 %v236
    %v1033 = vpop.f32.mrf.mxu0
    %v1034 = vadd.f32 %v264, %v1033
    %v1035 = vpop.f32.mrf.mxu0
    %v1036 = vadd.f32 %v268, %v1035
    %v1037 = vpop.f32.mrf.mxu0
    %v1038 = vadd.f32 %v264, %v1037
    %v1039 = vpop.f32.mrf.mxu0
    %v1040 = vadd.f32 %v268, %v1039
    %1041 = vdwg.mxu0
    %1042 = vmatprep.subr.bf16.mxu0 %v752
    %1043 = vmatpush1.bf16.msra.mxu0 %v751
    %1044 = vmatprep.subr.bf16.mxu0 %v748
    %1045 = vmatpush1.bf16.msra.mxu0 %v747
    %1046 = vmatprep.subr.bf16.mxu0 %v744
    %1047 = vmatpush1.bf16.msra.mxu0 %v743
    %1048 = vmatprep.subr.bf16.mxu0 %v740
    %1049 = vmatpush1.bf16.msra.mxu0 %v739
    %1050 = vmatprep.subr.bf16.mxu0 %v736
    %1051 = vmatpush1.bf16.msra.mxu0 %v735
    %1052 = vmatprep.subr.bf16.mxu0 %v732
    %1053 = vmatpush1.bf16.msra.mxu0 %v731
    %1054 = vmatprep.subr.bf16.mxu0 %v728
    %1055 = vmatpush1.bf16.msra.mxu0 %v727
    %1056 = vmatprep.subr.bf16.mxu0 %v724
    %1057 = vmatpush1.bf16.msra.mxu0 %v723
    %1058 = vmatprep.subr.bf16.mxu0 %v784
    %1059 = vmatpush2.bf16.msra.mxu0 %v783
    %1060 = vmatprep.subr.bf16.mxu0 %v780
    %1061 = vmatpush2.bf16.msra.mxu0 %v779
    %1062 = vmatprep.subr.bf16.mxu0 %v776
    %1063 = vmatpush2.bf16.msra.mxu0 %v775
    %1064 = vmatprep.subr.bf16.mxu0 %v772
    %1065 = vmatpush2.bf16.msra.mxu0 %v771
    %1066 = vmatprep.subr.bf16.mxu0 %v768
    %1067 = vmatpush2.bf16.msra.mxu0 %v767
    %1068 = vmatprep.subr.bf16.mxu0 %v764
    %1069 = vmatpush2.bf16.msra.mxu0 %v763
    %1070 = vmatprep.subr.bf16.mxu0 %v760
    %1071 = vmatpush2.bf16.msra.mxu0 %v759
    %1072 = vmatprep.subr.bf16.mxu0 %v756
    %1073 = vmatpush2.bf16.msra.mxu0 %v755
    %1074 = vmatprep.mubr.bf16.mxu0 %v239
    %1075 = vmatmul.mubr.bf16.gmra.mxu0 %v238
    %v1076 = vpop.f32.mrf.mxu0
    %v1077 = vadd.f32 %v1034, %v1076
    %v1078 = vpop.f32.mrf.mxu0
    %v1079 = vadd.f32 %v1036, %v1078
    %v1080 = vpop.f32.mrf.mxu0
    %v1081 = vadd.f32 %v1038, %v1080
    %v1082 = vpop.f32.mrf.mxu0
    %v1083 = vadd.f32 %v1040, %v1082
    %1084 = vdwg.mxu0
    %v1085 = vmax.f32 %v991, 0.0
    %v1086 = vmax.f32 %v993, 0.0
    %v1087 = vmax.f32 %v1077, 0.0
    %v1088 = vmax.f32 %v1079, 0.0
    %v1089 = vmax.f32 %v995, 0.0
    %v1090 = vmax.f32 %v997, 0.0
    %v1091 = vmax.f32 %v1081, 0.0
    %v1092 = vmax.f32 %v1083, 0.0
    %1093 = vmatprep.subr.bf16.mxu0 %v686
    %1094 = vmatpush1.bf16.msra.mxu0 %v685
    %1095 = vmatprep.subr.bf16.mxu0 %v682
    %1096 = vmatpush1.bf16.msra.mxu0 %v681
    %1097 = vmatprep.subr.bf16.mxu0 %v678
    %1098 = vmatpush1.bf16.msra.mxu0 %v677
    %1099 = vmatprep.subr.bf16.mxu0 %v674
    %1100 = vmatpush1.bf16.msra.mxu0 %v673
    %1101 = vmatprep.subr.bf16.mxu0 %v670
    %1102 = vmatpush1.bf16.msra.mxu0 %v669
    %1103 = vmatprep.subr.bf16.mxu0 %v666
    %1104 = vmatpush1.bf16.msra.mxu0 %v665
    %1105 = vmatprep.subr.bf16.mxu0 %v662
    %1106 = vmatpush1.bf16.msra.mxu0 %v661
    %1107 = vmatprep.subr.bf16.mxu0 %v658
    %1108 = vmatpush1.bf16.msra.mxu0 %v657
    %1109 = vmatprep.subr.bf16.mxu0 %v718
    %1110 = vmatpush2.bf16.msra.mxu0 %v717
    %1111 = vmatprep.subr.bf16.mxu0 %v714
    %1112 = vmatpush2.bf16.msra.mxu0 %v713
    %1113 = vmatprep.subr.bf16.mxu0 %v710
    %1114 = vmatpush2.bf16.msra.mxu0 %v709
    %1115 = vmatprep.subr.bf16.mxu0 %v706
    %1116 = vmatpush2.bf16.msra.mxu0 %v705
    %1117 = vmatprep.subr.bf16.mxu0 %v702
    %1118 = vmatpush2.bf16.msra.mxu0 %v701
    %1119 = vmatprep.subr.bf16.mxu0 %v698
    %1120 = vmatpush2.bf16.msra.mxu0 %v697
    %1121 = vmatprep.subr.bf16.mxu0 %v694
    %1122 = vmatpush2.bf16.msra.mxu0 %v693
    %1123 = vmatprep.subr.bf16.mxu0 %v690
    %1124 = vmatpush2.bf16.msra.mxu0 %v689
    %1125 = vmatprep.mubr.bf16.mxu0 %v249
    %1126 = vmatmul.mubr.bf16.gmra.mxu0 %v248
    %v1127 = vpop.f32.mrf.mxu0
    %v1128 = vadd.f32 %v256, %v1127
    %v1129 = vpop.f32.mrf.mxu0
    %v1130 = vadd.f32 %v260, %v1129
    %v1131 = vpop.f32.mrf.mxu0
    %v1132 = vadd.f32 %v256, %v1131
    %v1133 = vpop.f32.mrf.mxu0
    %v1134 = vadd.f32 %v260, %v1133
    %1135 = vdwg.mxu0
    %1136 = vmatprep.subr.bf16.mxu0 %v750
    %1137 = vmatpush1.bf16.msra.mxu0 %v749
    %1138 = vmatprep.subr.bf16.mxu0 %v746
    %1139 = vmatpush1.bf16.msra.mxu0 %v745
    %1140 = vmatprep.subr.bf16.mxu0 %v742
    %1141 = vmatpush1.bf16.msra.mxu0 %v741
    %1142 = vmatprep.subr.bf16.mxu0 %v738
    %1143 = vmatpush1.bf16.msra.mxu0 %v737
    %1144 = vmatprep.subr.bf16.mxu0 %v734
    %1145 = vmatpush1.bf16.msra.mxu0 %v733
    %1146 = vmatprep.subr.bf16.mxu0 %v730
    %1147 = vmatpush1.bf16.msra.mxu0 %v729
    %1148 = vmatprep.subr.bf16.mxu0 %v726
    %1149 = vmatpush1.bf16.msra.mxu0 %v725
    %1150 = vmatprep.subr.bf16.mxu0 %v722
    %1151 = vmatpush1.bf16.msra.mxu0 %v721
    %1152 = vmatprep.subr.bf16.mxu0 %v782
    %1153 = vmatpush2.bf16.msra.mxu0 %v781
    %1154 = vmatprep.subr.bf16.mxu0 %v778
    %1155 = vmatpush2.bf16.msra.mxu0 %v777
    %1156 = vmatprep.subr.bf16.mxu0 %v774
    %1157 = vmatpush2.bf16.msra.mxu0 %v773
    %1158 = vmatprep.subr.bf16.mxu0 %v770
    %1159 = vmatpush2.bf16.msra.mxu0 %v769
    %1160 = vmatprep.subr.bf16.mxu0 %v766
    %1161 = vmatpush2.bf16.msra.mxu0 %v765
    %1162 = vmatprep.subr.bf16.mxu0 %v762
    %1163 = vmatpush2.bf16.msra.mxu0 %v761
    %1164 = vmatprep.subr.bf16.mxu0 %v758
    %1165 = vmatpush2.bf16.msra.mxu0 %v757
    %1166 = vmatprep.subr.bf16.mxu0 %v754
    %1167 = vmatpush2.bf16.msra.mxu0 %v753
    %1168 = vmatprep.mubr.bf16.mxu0 %v251
    %1169 = vmatmul.mubr.bf16.gmra.mxu0 %v250
    %v1170 = vpop.f32.mrf.mxu0
    %v1171 = vadd.f32 %v1128, %v1170
    %v1172 = vpop.f32.mrf.mxu0
    %v1173 = vadd.f32 %v1130, %v1172
    %v1174 = vpop.f32.mrf.mxu0
    %v1175 = vadd.f32 %v1132, %v1174
    %v1176 = vpop.f32.mrf.mxu0
    %v1177 = vadd.f32 %v1134, %v1176
    %1178 = vdwg.mxu0
    %1179 = vmatprep.subr.bf16.mxu0 %v688
    %1180 = vmatpush1.bf16.msra.mxu0 %v687
    %1181 = vmatprep.subr.bf16.mxu0 %v684
    %1182 = vmatpush1.bf16.msra.mxu0 %v683
    %1183 = vmatprep.subr.bf16.mxu0 %v680
    %1184 = vmatpush1.bf16.msra.mxu0 %v679
    %1185 = vmatprep.subr.bf16.mxu0 %v676
    %1186 = vmatpush1.bf16.msra.mxu0 %v675
    %1187 = vmatprep.subr.bf16.mxu0 %v672
    %1188 = vmatpush1.bf16.msra.mxu0 %v671
    %1189 = vmatprep.subr.bf16.mxu0 %v668
    %1190 = vmatpush1.bf16.msra.mxu0 %v667
    %1191 = vmatprep.subr.bf16.mxu0 %v664
    %1192 = vmatpush1.bf16.msra.mxu0 %v663
    %1193 = vmatprep.subr.bf16.mxu0 %v660
    %1194 = vmatpush1.bf16.msra.mxu0 %v659
    %1195 = vmatprep.subr.bf16.mxu0 %v720
    %1196 = vmatpush2.bf16.msra.mxu0 %v719
    %1197 = vmatprep.subr.bf16.mxu0 %v716
    %1198 = vmatpush2.bf16.msra.mxu0 %v715
    %1199 = vmatprep.subr.bf16.mxu0 %v712
    %1200 = vmatpush2.bf16.msra.mxu0 %v711
    %1201 = vmatprep.subr.bf16.mxu0 %v708
    %1202 = vmatpush2.bf16.msra.mxu0 %v707
    %1203 = vmatprep.subr.bf16.mxu0 %v704
    %1204 = vmatpush2.bf16.msra.mxu0 %v703
    %1205 = vmatprep.subr.bf16.mxu0 %v700
    %1206 = vmatpush2.bf16.msra.mxu0 %v699
    %1207 = vmatprep.subr.bf16.mxu0 %v696
    %1208 = vmatpush2.bf16.msra.mxu0 %v695
    %1209 = vmatprep.subr.bf16.mxu0 %v692
    %1210 = vmatpush2.bf16.msra.mxu0 %v691
    %1211 = vmatprep.mubr.bf16.mxu0 %v249
    %1212 = vmatmul.mubr.bf16.gmra.mxu0 %v248
    %v1213 = vpop.f32.mrf.mxu0
    %v1214 = vadd.f32 %v264, %v1213
    %v1215 = vpop.f32.mrf.mxu0
    %v1216 = vadd.f32 %v268, %v1215
    %v1217 = vpop.f32.mrf.mxu0
    %v1218 = vadd.f32 %v264, %v1217
    %v1219 = vpop.f32.mrf.mxu0
    %v1220 = vadd.f32 %v268, %v1219
    %1221 = vdwg.mxu0
    %1222 = vmatprep.subr.bf16.mxu0 %v752
    %1223 = vmatpush1.bf16.msra.mxu0 %v751
    %1224 = vmatprep.subr.bf16.mxu0 %v748
    %1225 = vmatpush1.bf16.msra.mxu0 %v747
    %1226 = vmatprep.subr.bf16.mxu0 %v744
    %1227 = vmatpush1.bf16.msra.mxu0 %v743
    %1228 = vmatprep.subr.bf16.mxu0 %v740
    %1229 = vmatpush1.bf16.msra.mxu0 %v739
    %1230 = vmatprep.subr.bf16.mxu0 %v736
    %1231 = vmatpush1.bf16.msra.mxu0 %v735
    %1232 = vmatprep.subr.bf16.mxu0 %v732
    %1233 = vmatpush1.bf16.msra.mxu0 %v731
    %1234 = vmatprep.subr.bf16.mxu0 %v728
    %1235 = vmatpush1.bf16.msra.mxu0 %v727
    %1236 = vmatprep.subr.bf16.mxu0 %v724
    %1237 = vmatpush1.bf16.msra.mxu0 %v723
    %1238 = vmatprep.subr.bf16.mxu0 %v784
    %1239 = vmatpush2.bf16.msra.mxu0 %v783
    %1240 = vmatprep.subr.bf16.mxu0 %v780
    %1241 = vmatpush2.bf16.msra.mxu0 %v779
    %1242 = vmatprep.subr.bf16.mxu0 %v776
    %1243 = vmatpush2.bf16.msra.mxu0 %v775
    %1244 = vmatprep.subr.bf16.mxu0 %v772
    %1245 = vmatpush2.bf16.msra.mxu0 %v771
    %1246 = vmatprep.subr.bf16.mxu0 %v768
    %1247 = vmatpush2.bf16.msra.mxu0 %v767
    %1248 = vmatprep.subr.bf16.mxu0 %v764
    %1249 = vmatpush2.bf16.msra.mxu0 %v763
    %1250 = vmatprep.subr.bf16.mxu0 %v760
    %1251 = vmatpush2.bf16.msra.mxu0 %v759
    %1252 = vmatprep.subr.bf16.mxu0 %v756
    %1253 = vmatpush2.bf16.msra.mxu0 %v755
    %1254 = vmatprep.mubr.bf16.mxu0 %v251
    %1255 = vmatmul.mubr.bf16.gmra.mxu0 %v250
    %v1256 = vpop.f32.mrf.mxu0
    %v1257 = vadd.f32 %v1214, %v1256
    %v1258 = vpop.f32.mrf.mxu0
    %v1259 = vadd.f32 %v1216, %v1258
    %v1260 = vpop.f32.mrf.mxu0
    %v1261 = vadd.f32 %v1218, %v1260
    %v1262 = vpop.f32.mrf.mxu0
    %v1263 = vadd.f32 %v1220, %v1262
    %1264 = vdwg.mxu0
    %v1265 = vmax.f32 %v1171, 0.0
    %v1266 = vmax.f32 %v1173, 0.0
    %v1267 = vmax.f32 %v1257, 0.0
    %v1268 = vmax.f32 %v1259, 0.0
    %v1269 = vmax.f32 %v1175, 0.0
    %v1270 = vmax.f32 %v1177, 0.0
    %v1271 = vmax.f32 %v1261, 0.0
    %v1272 = vmax.f32 %v1263, 0.0
    %v1273 = vmul.f32 %v1085, %v1265
    %v1274 = vmul.f32 %v1086, %v1266
    %v1275 = vmul.f32 %v1087, %v1267
    %v1276 = vmul.f32 %v1088, %v1268
    %v1277 = vmul.f32 %v1089, %v1269
    %v1278 = vmul.f32 %v1090, %v1270
    %v1279 = vmul.f32 %v1091, %v1271
    %v1280 = vmul.f32 %v1092, %v1272
    %v1281 = vpack.c.bf16 %v1277, %v1273
    %v1282 = vpack.c.bf16 %v1278, %v1274
    %v1283 = vpack.c.bf16 %v1279, %v1275
    %v1284 = vpack.c.bf16 %v1280, %v1276
    %v1285 = vld [vmem:[#allocation8] sm:$0xff]
    %v1286 = vld [vmem:[#allocation8 + $0x8] sm:$0xff]
    %v1287 = vld [vmem:[#allocation8 + $0x10] sm:$0xff]
    %v1288 = vld [vmem:[#allocation8 + $0x18] sm:$0xff]
    %v1289 = vld [vmem:[#allocation8 + $0x20] sm:$0xff]
    %v1290 = vld [vmem:[#allocation8 + $0x28] sm:$0xff]
    %v1291 = vld [vmem:[#allocation8 + $0x30] sm:$0xff]
    %v1292 = vld [vmem:[#allocation8 + $0x38] sm:$0xff]
    %v1293 = vld [vmem:[#allocation8 + $0x40] sm:$0xff]
    %v1294 = vld [vmem:[#allocation8 + $0x48] sm:$0xff]
    %v1295 = vld [vmem:[#allocation8 + $0x50] sm:$0xff]
    %v1296 = vld [vmem:[#allocation8 + $0x58] sm:$0xff]
    %v1297 = vld [vmem:[#allocation8 + $0x60] sm:$0xff]
    %v1298 = vld [vmem:[#allocation8 + $0x68] sm:$0xff]
    %v1299 = vld [vmem:[#allocation8 + $0x70] sm:$0xff]
    %v1300 = vld [vmem:[#allocation8 + $0x78] sm:$0xff]
    %v1301 = vld [vmem:[#allocation8 + $0x80] sm:$0xff]
    %v1302 = vld [vmem:[#allocation8 + $0x88] sm:$0xff]
    %v1303 = vld [vmem:[#allocation8 + $0x90] sm:$0xff]
    %v1304 = vld [vmem:[#allocation8 + $0x98] sm:$0xff]
    %v1305 = vld [vmem:[#allocation8 + $0xa0] sm:$0xff]
    %v1306 = vld [vmem:[#allocation8 + $0xa8] sm:$0xff]
    %v1307 = vld [vmem:[#allocation8 + $0xb0] sm:$0xff]
    %v1308 = vld [vmem:[#allocation8 + $0xb8] sm:$0xff]
    %v1309 = vld [vmem:[#allocation8 + $0xc0] sm:$0xff]
    %v1310 = vld [vmem:[#allocation8 + $0xc8] sm:$0xff]
    %v1311 = vld [vmem:[#allocation8 + $0xd0] sm:$0xff]
    %v1312 = vld [vmem:[#allocation8 + $0xd8] sm:$0xff]
    %v1313 = vld [vmem:[#allocation8 + $0xe0] sm:$0xff]
    %v1314 = vld [vmem:[#allocation8 + $0xe8] sm:$0xff]
    %v1315 = vld [vmem:[#allocation8 + $0xf0] sm:$0xff]
    %v1316 = vld [vmem:[#allocation8 + $0xf8] sm:$0xff]
    %v1317 = vld [vmem:[#allocation8 + $0x100] sm:$0xff]
    %v1318 = vld [vmem:[#allocation8 + $0x108] sm:$0xff]
    %v1319 = vld [vmem:[#allocation8 + $0x110] sm:$0xff]
    %v1320 = vld [vmem:[#allocation8 + $0x118] sm:$0xff]
    %v1321 = vld [vmem:[#allocation8 + $0x120] sm:$0xff]
    %v1322 = vld [vmem:[#allocation8 + $0x128] sm:$0xff]
    %v1323 = vld [vmem:[#allocation8 + $0x130] sm:$0xff]
    %v1324 = vld [vmem:[#allocation8 + $0x138] sm:$0xff]
    %v1325 = vld [vmem:[#allocation8 + $0x140] sm:$0xff]
    %v1326 = vld [vmem:[#allocation8 + $0x148] sm:$0xff]
    %v1327 = vld [vmem:[#allocation8 + $0x150] sm:$0xff]
    %v1328 = vld [vmem:[#allocation8 + $0x158] sm:$0xff]
    %v1329 = vld [vmem:[#allocation8 + $0x160] sm:$0xff]
    %v1330 = vld [vmem:[#allocation8 + $0x168] sm:$0xff]
    %v1331 = vld [vmem:[#allocation8 + $0x170] sm:$0xff]
    %v1332 = vld [vmem:[#allocation8 + $0x178] sm:$0xff]
    %v1333 = vld [vmem:[#allocation8 + $0x180] sm:$0xff]
    %v1334 = vld [vmem:[#allocation8 + $0x188] sm:$0xff]
    %v1335 = vld [vmem:[#allocation8 + $0x190] sm:$0xff]
    %v1336 = vld [vmem:[#allocation8 + $0x198] sm:$0xff]
    %v1337 = vld [vmem:[#allocation8 + $0x1a0] sm:$0xff]
    %v1338 = vld [vmem:[#allocation8 + $0x1a8] sm:$0xff]
    %v1339 = vld [vmem:[#allocation8 + $0x1b0] sm:$0xff]
    %v1340 = vld [vmem:[#allocation8 + $0x1b8] sm:$0xff]
    %v1341 = vld [vmem:[#allocation8 + $0x1c0] sm:$0xff]
    %v1342 = vld [vmem:[#allocation8 + $0x1c8] sm:$0xff]
    %v1343 = vld [vmem:[#allocation8 + $0x1d0] sm:$0xff]
    %v1344 = vld [vmem:[#allocation8 + $0x1d8] sm:$0xff]
    %v1345 = vld [vmem:[#allocation8 + $0x1e0] sm:$0xff]
    %v1346 = vld [vmem:[#allocation8 + $0x1e8] sm:$0xff]
    %v1347 = vld [vmem:[#allocation8 + $0x1f0] sm:$0xff]
    %v1348 = vld [vmem:[#allocation8 + $0x1f8] sm:$0xff]
    %v1349 = vld [vmem:[%s5] sm:$0x3]
    %v1351 = vlaneseq
    %v1352 = vshrl.u32 %v1351, 7
    %v1353 = vsub.s32 0, %v1352
    %v1354 = vrot.slane %v1349, %v1353
    %v1355 = vlaneseq
    %v1356 = vshrl.u32 %v1355, 7
    %v1357 = vsub.s32 1, %v1356
    %v1358 = vrot.slane %v1349, %v1357
    %v1425 = vunpack.c.l.b16 %v1285
    %v1426 = vunpack.c.h.b16 %v1285
    %v1427 = vunpack.c.l.b16 %v1286
    %v1428 = vunpack.c.h.b16 %v1286
    %v1429 = vunpack.c.l.b16 %v1287
    %v1430 = vunpack.c.h.b16 %v1287
    %v1431 = vunpack.c.l.b16 %v1288
    %v1432 = vunpack.c.h.b16 %v1288
    %v1433 = vunpack.c.l.b16 %v1289
    %v1434 = vunpack.c.h.b16 %v1289
    %v1435 = vunpack.c.l.b16 %v1290
    %v1436 = vunpack.c.h.b16 %v1290
    %v1437 = vunpack.c.l.b16 %v1291
    %v1438 = vunpack.c.h.b16 %v1291
    %v1439 = vunpack.c.l.b16 %v1292
    %v1440 = vunpack.c.h.b16 %v1292
    %v1441 = vunpack.c.l.b16 %v1293
    %v1442 = vunpack.c.h.b16 %v1293
    %v1443 = vunpack.c.l.b16 %v1294
    %v1444 = vunpack.c.h.b16 %v1294
    %v1445 = vunpack.c.l.b16 %v1295
    %v1446 = vunpack.c.h.b16 %v1295
    %v1447 = vunpack.c.l.b16 %v1296
    %v1448 = vunpack.c.h.b16 %v1296
    %v1449 = vunpack.c.l.b16 %v1297
    %v1450 = vunpack.c.h.b16 %v1297
    %v1451 = vunpack.c.l.b16 %v1298
    %v1452 = vunpack.c.h.b16 %v1298
    %v1453 = vunpack.c.l.b16 %v1299
    %v1454 = vunpack.c.h.b16 %v1299
    %v1455 = vunpack.c.l.b16 %v1300
    %v1456 = vunpack.c.h.b16 %v1300
    %v1457 = vunpack.c.l.b16 %v1301
    %v1458 = vunpack.c.h.b16 %v1301
    %v1459 = vunpack.c.l.b16 %v1302
    %v1460 = vunpack.c.h.b16 %v1302
    %v1461 = vunpack.c.l.b16 %v1303
    %v1462 = vunpack.c.h.b16 %v1303
    %v1463 = vunpack.c.l.b16 %v1304
    %v1464 = vunpack.c.h.b16 %v1304
    %v1465 = vunpack.c.l.b16 %v1305
    %v1466 = vunpack.c.h.b16 %v1305
    %v1467 = vunpack.c.l.b16 %v1306
    %v1468 = vunpack.c.h.b16 %v1306
    %v1469 = vunpack.c.l.b16 %v1307
    %v1470 = vunpack.c.h.b16 %v1307
    %v1471 = vunpack.c.l.b16 %v1308
    %v1472 = vunpack.c.h.b16 %v1308
    %v1473 = vunpack.c.l.b16 %v1309
    %v1474 = vunpack.c.h.b16 %v1309
    %v1475 = vunpack.c.l.b16 %v1310
    %v1476 = vunpack.c.h.b16 %v1310
    %v1477 = vunpack.c.l.b16 %v1311
    %v1478 = vunpack.c.h.b16 %v1311
    %v1479 = vunpack.c.l.b16 %v1312
    %v1480 = vunpack.c.h.b16 %v1312
    %v1481 = vunpack.c.l.b16 %v1313
    %v1482 = vunpack.c.h.b16 %v1313
    %v1483 = vunpack.c.l.b16 %v1314
    %v1484 = vunpack.c.h.b16 %v1314
    %v1485 = vunpack.c.l.b16 %v1315
    %v1486 = vunpack.c.h.b16 %v1315
    %v1487 = vunpack.c.l.b16 %v1316
    %v1488 = vunpack.c.h.b16 %v1316
    %v1489 = vunpack.c.l.b16 %v1317
    %v1490 = vunpack.c.h.b16 %v1317
    %v1491 = vunpack.c.l.b16 %v1318
    %v1492 = vunpack.c.h.b16 %v1318
    %v1493 = vunpack.c.l.b16 %v1319
    %v1494 = vunpack.c.h.b16 %v1319
    %v1495 = vunpack.c.l.b16 %v1320
    %v1496 = vunpack.c.h.b16 %v1320
    %v1497 = vunpack.c.l.b16 %v1321
    %v1498 = vunpack.c.h.b16 %v1321
    %v1499 = vunpack.c.l.b16 %v1322
    %v1500 = vunpack.c.h.b16 %v1322
    %v1501 = vunpack.c.l.b16 %v1323
    %v1502 = vunpack.c.h.b16 %v1323
    %v1503 = vunpack.c.l.b16 %v1324
    %v1504 = vunpack.c.h.b16 %v1324
    %v1505 = vunpack.c.l.b16 %v1325
    %v1506 = vunpack.c.h.b16 %v1325
    %v1507 = vunpack.c.l.b16 %v1326
    %v1508 = vunpack.c.h.b16 %v1326
    %v1509 = vunpack.c.l.b16 %v1327
    %v1510 = vunpack.c.h.b16 %v1327
    %v1511 = vunpack.c.l.b16 %v1328
    %v1512 = vunpack.c.h.b16 %v1328
    %v1513 = vunpack.c.l.b16 %v1329
    %v1514 = vunpack.c.h.b16 %v1329
    %v1515 = vunpack.c.l.b16 %v1330
    %v1516 = vunpack.c.h.b16 %v1330
    %v1517 = vunpack.c.l.b16 %v1331
    %v1518 = vunpack.c.h.b16 %v1331
    %v1519 = vunpack.c.l.b16 %v1332
    %v1520 = vunpack.c.h.b16 %v1332
    %v1521 = vunpack.c.l.b16 %v1333
    %v1522 = vunpack.c.h.b16 %v1333
    %v1523 = vunpack.c.l.b16 %v1334
    %v1524 = vunpack.c.h.b16 %v1334
    %v1525 = vunpack.c.l.b16 %v1335
    %v1526 = vunpack.c.h.b16 %v1335
    %v1527 = vunpack.c.l.b16 %v1336
    %v1528 = vunpack.c.h.b16 %v1336
    %v1529 = vunpack.c.l.b16 %v1337
    %v1530 = vunpack.c.h.b16 %v1337
    %v1531 = vunpack.c.l.b16 %v1338
    %v1532 = vunpack.c.h.b16 %v1338
    %v1533 = vunpack.c.l.b16 %v1339
    %v1534 = vunpack.c.h.b16 %v1339
    %v1535 = vunpack.c.l.b16 %v1340
    %v1536 = vunpack.c.h.b16 %v1340
    %v1537 = vunpack.c.l.b16 %v1341
    %v1538 = vunpack.c.h.b16 %v1341
    %v1539 = vunpack.c.l.b16 %v1342
    %v1540 = vunpack.c.h.b16 %v1342
    %v1541 = vunpack.c.l.b16 %v1343
    %v1542 = vunpack.c.h.b16 %v1343
    %v1543 = vunpack.c.l.b16 %v1344
    %v1544 = vunpack.c.h.b16 %v1344
    %v1545 = vunpack.c.l.b16 %v1345
    %v1546 = vunpack.c.h.b16 %v1345
    %v1547 = vunpack.c.l.b16 %v1346
    %v1548 = vunpack.c.h.b16 %v1346
    %v1549 = vunpack.c.l.b16 %v1347
    %v1550 = vunpack.c.h.b16 %v1347
    %v1551 = vunpack.c.l.b16 %v1348
    %v1552 = vunpack.c.h.b16 %v1348
    %v1553 = vpack.c.b16 %v1427, %v1425
    %v1554 = vpack.c.b16 %v1428, %v1426
    %v1555 = vpack.c.b16 %v1431, %v1429
    %v1556 = vpack.c.b16 %v1432, %v1430
    %v1557 = vpack.c.b16 %v1435, %v1433
    %v1558 = vpack.c.b16 %v1436, %v1434
    %v1559 = vpack.c.b16 %v1439, %v1437
    %v1560 = vpack.c.b16 %v1440, %v1438
    %v1561 = vpack.c.b16 %v1443, %v1441
    %v1562 = vpack.c.b16 %v1444, %v1442
    %v1563 = vpack.c.b16 %v1447, %v1445
    %v1564 = vpack.c.b16 %v1448, %v1446
    %v1565 = vpack.c.b16 %v1451, %v1449
    %v1566 = vpack.c.b16 %v1452, %v1450
    %v1567 = vpack.c.b16 %v1455, %v1453
    %v1568 = vpack.c.b16 %v1456, %v1454
    %v1569 = vpack.c.b16 %v1459, %v1457
    %v1570 = vpack.c.b16 %v1460, %v1458
    %v1571 = vpack.c.b16 %v1463, %v1461
    %v1572 = vpack.c.b16 %v1464, %v1462
    %v1573 = vpack.c.b16 %v1467, %v1465
    %v1574 = vpack.c.b16 %v1468, %v1466
    %v1575 = vpack.c.b16 %v1471, %v1469
    %v1576 = vpack.c.b16 %v1472, %v1470
    %v1577 = vpack.c.b16 %v1475, %v1473
    %v1578 = vpack.c.b16 %v1476, %v1474
    %v1579 = vpack.c.b16 %v1479, %v1477
    %v1580 = vpack.c.b16 %v1480, %v1478
    %v1581 = vpack.c.b16 %v1483, %v1481
    %v1582 = vpack.c.b16 %v1484, %v1482
    %v1583 = vpack.c.b16 %v1487, %v1485
    %v1584 = vpack.c.b16 %v1488, %v1486
    %v1585 = vpack.c.b16 %v1491, %v1489
    %v1586 = vpack.c.b16 %v1492, %v1490
    %v1587 = vpack.c.b16 %v1495, %v1493
    %v1588 = vpack.c.b16 %v1496, %v1494
    %v1589 = vpack.c.b16 %v1499, %v1497
    %v1590 = vpack.c.b16 %v1500, %v1498
    %v1591 = vpack.c.b16 %v1503, %v1501
    %v1592 = vpack.c.b16 %v1504, %v1502
    %v1593 = vpack.c.b16 %v1507, %v1505
    %v1594 = vpack.c.b16 %v1508, %v1506
    %v1595 = vpack.c.b16 %v1511, %v1509
    %v1596 = vpack.c.b16 %v1512, %v1510
    %v1597 = vpack.c.b16 %v1515, %v1513
    %v1598 = vpack.c.b16 %v1516, %v1514
    %v1599 = vpack.c.b16 %v1519, %v1517
    %v1600 = vpack.c.b16 %v1520, %v1518
    %v1601 = vpack.c.b16 %v1523, %v1521
    %v1602 = vpack.c.b16 %v1524, %v1522
    %v1603 = vpack.c.b16 %v1527, %v1525
    %v1604 = vpack.c.b16 %v1528, %v1526
    %v1605 = vpack.c.b16 %v1531, %v1529
    %v1606 = vpack.c.b16 %v1532, %v1530
    %v1607 = vpack.c.b16 %v1535, %v1533
    %v1608 = vpack.c.b16 %v1536, %v1534
    %v1609 = vpack.c.b16 %v1539, %v1537
    %v1610 = vpack.c.b16 %v1540, %v1538
    %v1611 = vpack.c.b16 %v1543, %v1541
    %v1612 = vpack.c.b16 %v1544, %v1542
    %v1613 = vpack.c.b16 %v1547, %v1545
    %v1614 = vpack.c.b16 %v1548, %v1546
    %v1615 = vpack.c.b16 %v1551, %v1549
    %v1616 = vpack.c.b16 %v1552, %v1550
    %1681 = vmatprep.subr.bf16.mxu0 %v1568
    %1682 = vmatpush1.bf16.msra.mxu0 %v1567
    %1683 = vmatprep.subr.bf16.mxu0 %v1566
    %1684 = vmatpush1.bf16.msra.mxu0 %v1565
    %1685 = vmatprep.subr.bf16.mxu0 %v1564
    %1686 = vmatpush1.bf16.msra.mxu0 %v1563
    %1687 = vmatprep.subr.bf16.mxu0 %v1562
    %1688 = vmatpush1.bf16.msra.mxu0 %v1561
    %1689 = vmatprep.subr.bf16.mxu0 %v1560
    %1690 = vmatpush1.bf16.msra.mxu0 %v1559
    %1691 = vmatprep.subr.bf16.mxu0 %v1558
    %1692 = vmatpush1.bf16.msra.mxu0 %v1557
    %1693 = vmatprep.subr.bf16.mxu0 %v1556
    %1694 = vmatpush1.bf16.msra.mxu0 %v1555
    %1695 = vmatprep.subr.bf16.mxu0 %v1554
    %1696 = vmatpush1.bf16.msra.mxu0 %v1553
    %1697 = vmatprep.subr.bf16.mxu0 %v1584
    %1698 = vmatpush2.bf16.msra.mxu0 %v1583
    %1699 = vmatprep.subr.bf16.mxu0 %v1582
    %1700 = vmatpush2.bf16.msra.mxu0 %v1581
    %1701 = vmatprep.subr.bf16.mxu0 %v1580
    %1702 = vmatpush2.bf16.msra.mxu0 %v1579
    %1703 = vmatprep.subr.bf16.mxu0 %v1578
    %1704 = vmatpush2.bf16.msra.mxu0 %v1577
    %1705 = vmatprep.subr.bf16.mxu0 %v1576
    %1706 = vmatpush2.bf16.msra.mxu0 %v1575
    %1707 = vmatprep.subr.bf16.mxu0 %v1574
    %1708 = vmatpush2.bf16.msra.mxu0 %v1573
    %1709 = vmatprep.subr.bf16.mxu0 %v1572
    %1710 = vmatpush2.bf16.msra.mxu0 %v1571
    %1711 = vmatprep.subr.bf16.mxu0 %v1570
    %1712 = vmatpush2.bf16.msra.mxu0 %v1569
    %1713 = vmatprep.mubr.bf16.mxu0 %v1282
    %1714 = vmatmul.mubr.bf16.gmra.mxu0 %v1281
    %v1715 = vpop.f32.mrf.mxu0
    %v1716 = vadd.f32 %v1354, %v1715
    %v1717 = vpop.f32.mrf.mxu0
    %v1718 = vadd.f32 %v1358, %v1717
    %v1719 = vpop.f32.mrf.mxu0
    %v1720 = vadd.f32 %v1354, %v1719
    %v1721 = vpop.f32.mrf.mxu0
    %v1722 = vadd.f32 %v1358, %v1721
    %1723 = vdwg.mxu0
    %1724 = vmatprep.subr.bf16.mxu0 %v1600
    %1725 = vmatpush1.bf16.msra.mxu0 %v1599
    %1726 = vmatprep.subr.bf16.mxu0 %v1598
    %1727 = vmatpush1.bf16.msra.mxu0 %v1597
    %1728 = vmatprep.subr.bf16.mxu0 %v1596
    %1729 = vmatpush1.bf16.msra.mxu0 %v1595
    %1730 = vmatprep.subr.bf16.mxu0 %v1594
    %1731 = vmatpush1.bf16.msra.mxu0 %v1593
    %1732 = vmatprep.subr.bf16.mxu0 %v1592
    %1733 = vmatpush1.bf16.msra.mxu0 %v1591
    %1734 = vmatprep.subr.bf16.mxu0 %v1590
    %1735 = vmatpush1.bf16.msra.mxu0 %v1589
    %1736 = vmatprep.subr.bf16.mxu0 %v1588
    %1737 = vmatpush1.bf16.msra.mxu0 %v1587
    %1738 = vmatprep.subr.bf16.mxu0 %v1586
    %1739 = vmatpush1.bf16.msra.mxu0 %v1585
    %1740 = vmatprep.subr.bf16.mxu0 %v1616
    %1741 = vmatpush2.bf16.msra.mxu0 %v1615
    %1742 = vmatprep.subr.bf16.mxu0 %v1614
    %1743 = vmatpush2.bf16.msra.mxu0 %v1613
    %1744 = vmatprep.subr.bf16.mxu0 %v1612
    %1745 = vmatpush2.bf16.msra.mxu0 %v1611
    %1746 = vmatprep.subr.bf16.mxu0 %v1610
    %1747 = vmatpush2.bf16.msra.mxu0 %v1609
    %1748 = vmatprep.subr.bf16.mxu0 %v1608
    %1749 = vmatpush2.bf16.msra.mxu0 %v1607
    %1750 = vmatprep.subr.bf16.mxu0 %v1606
    %1751 = vmatpush2.bf16.msra.mxu0 %v1605
    %1752 = vmatprep.subr.bf16.mxu0 %v1604
    %1753 = vmatpush2.bf16.msra.mxu0 %v1603
    %1754 = vmatprep.subr.bf16.mxu0 %v1602
    %1755 = vmatpush2.bf16.msra.mxu0 %v1601
    %1756 = vmatprep.mubr.bf16.mxu0 %v1284
    %1757 = vmatmul.mubr.bf16.gmra.mxu0 %v1283
    %v1758 = vpop.f32.mrf.mxu0
    %v1759 = vadd.f32 %v1716, %v1758
    %v1760 = vpop.f32.mrf.mxu0
    %v1761 = vadd.f32 %v1718, %v1760
    %v1762 = vpop.f32.mrf.mxu0
    %v1763 = vadd.f32 %v1720, %v1762
    %v1764 = vpop.f32.mrf.mxu0
    %v1765 = vadd.f32 %v1722, %v1764
    %1766 = vdwg.mxu0
    %v1767 = vmax.f32 %v1759, 0.0
    %v1768 = vmax.f32 %v1761, 0.0
    %v1769 = vmax.f32 %v1763, 0.0
    %v1770 = vmax.f32 %v1765, 0.0
    %v1771 = vpack.c.bf16 %v1769, %v1767
    %v1772 = vpack.c.bf16 %v1770, %v1768
    %v1773 = vld [vmem:[#allocation10] sm:$0xf]
    %v1774 = vld [vmem:[#allocation10 + $0x4] sm:$0xf]
    %v1775 = vld [vmem:[#allocation10 + $0x8] sm:$0xf]
    %v1776 = vld [vmem:[#allocation10 + $0xc] sm:$0xf]
    %v1777 = vld [vmem:[#allocation10 + $0x10] sm:$0xf]
    %v1778 = vld [vmem:[#allocation10 + $0x14] sm:$0xf]
    %v1779 = vld [vmem:[#allocation10 + $0x18] sm:$0xf]
    %v1780 = vld [vmem:[#allocation10 + $0x1c] sm:$0xf]
    %v1781 = vld [vmem:[#allocation10 + $0x20] sm:$0xf]
    %v1782 = vld [vmem:[#allocation10 + $0x24] sm:$0xf]
    %v1783 = vld [vmem:[#allocation10 + $0x28] sm:$0xf]
    %v1784 = vld [vmem:[#allocation10 + $0x2c] sm:$0xf]
    %v1785 = vld [vmem:[#allocation10 + $0x30] sm:$0xf]
    %v1786 = vld [vmem:[#allocation10 + $0x34] sm:$0xf]
    %v1787 = vld [vmem:[#allocation10 + $0x38] sm:$0xf]
    %v1788 = vld [vmem:[#allocation10 + $0x3c] sm:$0xf]
    %v1789 = vld [vmem:[#allocation10 + $0x40] sm:$0xf]
    %v1790 = vld [vmem:[#allocation10 + $0x44] sm:$0xf]
    %v1791 = vld [vmem:[#allocation10 + $0x48] sm:$0xf]
    %v1792 = vld [vmem:[#allocation10 + $0x4c] sm:$0xf]
    %v1793 = vld [vmem:[#allocation10 + $0x50] sm:$0xf]
    %v1794 = vld [vmem:[#allocation10 + $0x54] sm:$0xf]
    %v1795 = vld [vmem:[#allocation10 + $0x58] sm:$0xf]
    %v1796 = vld [vmem:[#allocation10 + $0x5c] sm:$0xf]
    %v1797 = vld [vmem:[#allocation10 + $0x60] sm:$0xf]
    %v1798 = vld [vmem:[#allocation10 + $0x64] sm:$0xf]
    %v1799 = vld [vmem:[#allocation10 + $0x68] sm:$0xf]
    %v1800 = vld [vmem:[#allocation10 + $0x6c] sm:$0xf]
    %v1801 = vld [vmem:[#allocation10 + $0x70] sm:$0xf]
    %v1802 = vld [vmem:[#allocation10 + $0x74] sm:$0xf]
    %v1803 = vld [vmem:[#allocation10 + $0x78] sm:$0xf]
    %v1804 = vld [vmem:[#allocation10 + $0x7c] sm:$0xf]
    %v1805 = vld [vmem:[%s7] sm:$0x1]
    %v1807 = vlaneseq
    %v1808 = vshrl.u32 %v1807, 7
    %v1809 = vsub.s32 0, %v1808
    %v1810 = vrot.slane %v1805, %v1809
    %v1844 = vunpack.c.l.b16 %v1773
    %v1845 = vunpack.c.l.b16 %v1774
    %v1846 = vunpack.c.l.b16 %v1775
    %v1847 = vunpack.c.l.b16 %v1776
    %v1848 = vunpack.c.l.b16 %v1777
    %v1849 = vunpack.c.l.b16 %v1778
    %v1850 = vunpack.c.l.b16 %v1779
    %v1851 = vunpack.c.l.b16 %v1780
    %v1852 = vunpack.c.l.b16 %v1781
    %v1853 = vunpack.c.l.b16 %v1782
    %v1854 = vunpack.c.l.b16 %v1783
    %v1855 = vunpack.c.l.b16 %v1784
    %v1856 = vunpack.c.l.b16 %v1785
    %v1857 = vunpack.c.l.b16 %v1786
    %v1858 = vunpack.c.l.b16 %v1787
    %v1859 = vunpack.c.l.b16 %v1788
    %v1860 = vunpack.c.l.b16 %v1789
    %v1861 = vunpack.c.l.b16 %v1790
    %v1862 = vunpack.c.l.b16 %v1791
    %v1863 = vunpack.c.l.b16 %v1792
    %v1864 = vunpack.c.l.b16 %v1793
    %v1865 = vunpack.c.l.b16 %v1794
    %v1866 = vunpack.c.l.b16 %v1795
    %v1867 = vunpack.c.l.b16 %v1796
    %v1868 = vunpack.c.l.b16 %v1797
    %v1869 = vunpack.c.l.b16 %v1798
    %v1870 = vunpack.c.l.b16 %v1799
    %v1871 = vunpack.c.l.b16 %v1800
    %v1872 = vunpack.c.l.b16 %v1801
    %v1873 = vunpack.c.l.b16 %v1802
    %v1874 = vunpack.c.l.b16 %v1803
    %v1875 = vunpack.c.l.b16 %v1804
    %v1876 = vpack.c.b16 %v1845, %v1844
    %v1877 = vpack.c.b16 %v1847, %v1846
    %v1878 = vpack.c.b16 %v1849, %v1848
    %v1879 = vpack.c.b16 %v1851, %v1850
    %v1880 = vpack.c.b16 %v1853, %v1852
    %v1881 = vpack.c.b16 %v1855, %v1854
    %v1882 = vpack.c.b16 %v1857, %v1856
    %v1883 = vpack.c.b16 %v1859, %v1858
    %v1884 = vpack.c.b16 %v1861, %v1860
    %v1885 = vpack.c.b16 %v1863, %v1862
    %v1886 = vpack.c.b16 %v1865, %v1864
    %v1887 = vpack.c.b16 %v1867, %v1866
    %v1888 = vpack.c.b16 %v1869, %v1868
    %v1889 = vpack.c.b16 %v1871, %v1870
    %v1890 = vpack.c.b16 %v1873, %v1872
    %v1891 = vpack.c.b16 %v1875, %v1874
    %1908 = vmatprep.subr.bf16.mxu0 0
    %1909 = vmatpush1.bf16.msra.mxu0 %v1883
    %1910 = vmatprep.subr.bf16.mxu0 0
    %1911 = vmatpush1.bf16.msra.mxu0 %v1882
    %1912 = vmatprep.subr.bf16.mxu0 0
    %1913 = vmatpush1.bf16.msra.mxu0 %v1881
    %1914 = vmatprep.subr.bf16.mxu0 0
    %1915 = vmatpush1.bf16.msra.mxu0 %v1880
    %1916 = vmatprep.subr.bf16.mxu0 0
    %1917 = vmatpush1.bf16.msra.mxu0 %v1879
    %1918 = vmatprep.subr.bf16.mxu0 0
    %1919 = vmatpush1.bf16.msra.mxu0 %v1878
    %1920 = vmatprep.subr.bf16.mxu0 0
    %1921 = vmatpush1.bf16.msra.mxu0 %v1877
    %1922 = vmatprep.subr.bf16.mxu0 0
    %1923 = vmatpush1.bf16.msra.mxu0 %v1876
    %1924 = vmatprep.subr.bf16.mxu0 0
    %1925 = vmatpush2.bf16.msra.mxu0 %v1891
    %1926 = vmatprep.subr.bf16.mxu0 0
    %1927 = vmatpush2.bf16.msra.mxu0 %v1890
    %1928 = vmatprep.subr.bf16.mxu0 0
    %1929 = vmatpush2.bf16.msra.mxu0 %v1889
    %1930 = vmatprep.subr.bf16.mxu0 0
    %1931 = vmatpush2.bf16.msra.mxu0 %v1888
    %1932 = vmatprep.subr.bf16.mxu0 0
    %1933 = vmatpush2.bf16.msra.mxu0 %v1887
    %1934 = vmatprep.subr.bf16.mxu0 0
    %1935 = vmatpush2.bf16.msra.mxu0 %v1886
    %1936 = vmatprep.subr.bf16.mxu0 0
    %1937 = vmatpush2.bf16.msra.mxu0 %v1885
    %1938 = vmatprep.subr.bf16.mxu0 0
    %1939 = vmatpush2.bf16.msra.mxu0 %v1884
    %1940 = vmatprep.mubr.bf16.mxu0 %v1772
    %1941 = vmatmul.mubr.bf16.gmra.mxu0 %v1771
    %v1942 = vpop.f32.mrf.mxu0
    %v1943 = vadd.f32 %v1810, %v1942
    %v1944 = vpop.f32.mrf.mxu0
    %v1945 = vpop.f32.mrf.mxu0
    %v1946 = vadd.f32 %v1810, %v1945
    %v1947 = vpop.f32.mrf.mxu0
    %1948 = vdwg.mxu0
    %v1949 = vlaneseq
    %v1950 = vand.u32 %v1949, 127
    %vm1951 = vcmp.eq.s32.totalorder %v1950, 2
    %v1952 = vxor.u32 %v1943, 2147483648
    %v1953 = vxor.u32 %v1946, 2147483648
    %v1954 = vmul.f32 %v1952, 1.442695
    %v1955 = vpow.pop %v1954
    %v1956 = vmul.f32 %v1953, 1.442695
    %v1957 = vpow.pop %v1956
    %v1958 = vadd.f32 %v1955, 1.0
    %v1959 = vadd.f32 %v1957, 1.0
    %v1960 = vrcp.pop %v1958
    %v1961 = vmul.f32 1.0, %v1960
    %v1962 = vrcp.pop %v1959
    %v1963 = vmul.f32 1.0, %v1962
    %v1964 = vsel %vm1951, %v1961, %v1943
    %v1965 = vsel %vm1951, %v1963, %v1946
    %v1966 = vpack.c.bf16 %v1965, %v1964
    %v1968 = vunpack.c.l.b16 %v1966
    %v1969 = vunpack.c.h.b16 %v1966
    %v1970 = vpack.c.b16 %v1968, %v1968
    %v1971 = vpack.c.b16 %v1969, %v1969
    %1974 = vst [vmem:[#allocation11] sm:$0xf] %v1970
    %1975 = vst [vmem:[#allocation11 + $0x4] sm:$0xf] %v1971
    // Predicated region
    $region54: #{tpu_custom_call.1} parent=1 // pred_check
      _
    $region55: #{tpu_custom_call.1} parent=1 // pred_check_branch
      %1977 = sbr.rel (0) target = $region57
    $region56: #{tpu_custom_call.1} parent=1 // pred_region
      %s1979 = ssub.s32 128, 128
      %1980 = vsyncadd [#allocation4], %s1979
      %s1981 = sshll.u32 [#allocation11], 4
      %s1982 = int_to_ptr.vmem [resolvable:$true] %s1981
      %1987 = dma.vmem_to_hbm [thread:$0]  %s1982, 128, %s8, [#allocation4], 64, 64, 4
    $region57: #{tpu_custom_call.1} parent=1 // pred_fallthru
      _
    // Predicated region
    $region58: #{tpu_custom_call.1} parent=1 // pred_check
      _
    $region59: #{tpu_custom_call.1} parent=1 // pred_check_branch
      %1989 = sbr.rel (0) target = $region61
    $region60: #{tpu_custom_call.1} parent=1 // pred_region
      %1990 = dma.done [#allocation4], 128
    $region61: #{tpu_custom_call.1} parent=1 // pred_fallthru
      _
    %1991 = vsyncpa [#allocation3], 1
    %1992 = vsyncpa [#allocation6], 1
    %1993 = vsyncpa [#allocation9], 1
    %1994 = vsyncpa [#allocation4], 1

</llo_original>
